<compile_context>
chip_gen: v5e
topology: v5e:2x2
jax: 0.10.0
libtpu: 0.0.40
codegen_flags: <defaults>
</compile_context>

<pallas_src>
import functools

import jax
import jax.numpy as jnp
from jax.experimental import pallas as pl
from jax.experimental.pallas import tpu as pltpu


def _round_up(x: int, m: int) -> int:
    return (x + m - 1) // m * m


def pet_head_kernel(x_ref, w1_ref, b1_ref, w2_ref, b2_ref, ids_ref,
                    per_atom_ref, struct_ref, *, dff_chunk):
    """One atom tile: chunked bf16 MXU GEMM -> GELU -> mat-vec -> segment sum."""
    tm = x_ref.shape[0]
    d_ff = w1_ref.shape[0]

    # Cast streamed activations to bf16 in-kernel (VPU); natural (tm, hidden).
    xb = x_ref[...].astype(jnp.bfloat16)

    # ---- per-atom readout, chunked over d_ff (bounds the live f32 intermediate)
    pred = jnp.zeros((1, tm), jnp.float32)
    for c in range(d_ff // dff_chunk):                    # static chunk count / slices
        sl = pl.ds(c * dff_chunk, dff_chunk)
        # MXU: (chunk, hidden)bf16 ⊗ (tm, hidden)bf16 contracting hidden<->hidden
        #      -> (chunk, tm) f32, atoms on lanes.
        hc = jax.lax.dot_general(
            w1_ref[sl, :], xb, (((1,), (1,)), ((), ())),
            preferred_element_type=jnp.float32)
        hc = jax.nn.gelu(hc + b1_ref[sl, :], approximate=True)     # EUP tanh
        # mat-vec against w2: VPU multiply + XLU sublane reduce -> (1, tm) row.
        pred = pred + jnp.sum(hc * w2_ref[sl, :], axis=0, keepdims=True)

    ids = ids_ref[...]                                    # (1, tm); -1 marks padding
    # b2 from SMEM scalar; zero out ragged-tail lanes (also kills NaN/garbage
    # from the boundary block of x).
    pred = jnp.where(ids >= 0, pred + b2_ref[0, 0], 0.0)
    per_atom_ref[...] = pred                              # lane-dense per-atom row

    # ---- sum_over_samples('atom'): one-hot contraction -> lane-dense partial row
    s_pad = struct_ref.shape[2]
    seg = jax.lax.broadcasted_iota(jnp.int32, (s_pad, tm), 0)
    onehot = (seg == ids).astype(jnp.float32)             # (s_pad, tm); 0 on pad lanes
    row = jax.lax.dot_general(                            # (1, tm) x (s_pad, tm)ᵀ
        pred, onehot, (((1,), (1,)), ((), ())),
        preferred_element_type=jnp.float32)               # -> (1, s_pad) on lanes
    struct_ref[...] = row.reshape(1, 1, s_pad)


def pet_forward(x, w1, b1, w2, b2, batch_ids, n_systems, *, tile_m=512):
    """Returns (per_atom_energy [N,1], per_structure_energy [S,1])."""
    n_atoms, hidden = x.shape
    d_ff = w1.shape[1]

    # Atom tile: multiple of 128 lanes; ensure >= 2 tiles when possible so the
    # "parallel" grid axis can feed both v7x TensorCores.
    tm = _round_up(max(128, min(tile_m, _round_up(n_atoms, 128))), 128)
    if _round_up(n_atoms, tm) == tm and n_atoms > 128:
        tm = _round_up((n_atoms + 1) // 2, 128)
    n_pad = _round_up(n_atoms, tm)
    num_tiles = n_pad // tm

    s_pad = _round_up(max(n_systems, 1), 128)             # structures on lanes

    # d_ff chunk for the in-kernel loop.
    dff_chunk = d_ff
    for cand in (512, 256, 128):
        if d_ff % cand == 0:
            dff_chunk = cand
            break
    # TODO(synk): production PET widths should pad hidden / d_ff to multiples
    # of 256 (v6e/v7x MXU; 128 on v5e) before calling.

    # Small resident operands only (x itself is streamed untouched from HBM).
    w1_t = w1.T.astype(jnp.bfloat16)                      # (d_ff, hidden) bf16
    b1_c = b1.reshape(d_ff, 1).astype(jnp.float32)        # (d_ff, 1)
    w2_c = w2.reshape(d_ff, 1).astype(jnp.float32)        # (d_ff, 1)
    b2_c = b2.reshape(1, 1).astype(jnp.float32)           # SMEM scalar
    ids = jnp.full((1, n_pad), -1, jnp.int32)
    ids = ids.at[0, :n_atoms].set(batch_ids.astype(jnp.int32))

    # VMEM budget: single-buffered weights + double-buffered x/ids/output tiles
    # + the chunked f32 intermediate; clamp to a cross-generation-safe cap
    # (v7x physical VMEM is 64 MiB per TensorCore; v5e/v6e have 128 MiB).
    est = (d_ff * hidden * 2 + 2 * d_ff * 4
           + 2 * tm * hidden * 4 + 2 * tm * 4 + 2 * tm * 4
           + 2 * s_pad * 4 + dff_chunk * tm * 4 + (2 << 20))
    vmem_limit = max(32 << 20, min(2 * est, 56 << 20))

    kernel = functools.partial(pet_head_kernel, dff_chunk=dff_chunk)

    per_atom_row, struct_partials = pl.pallas_call(
        kernel,
        out_shape=(
            jax.ShapeDtypeStruct((1, n_pad), jnp.float32),              # per-atom row
            jax.ShapeDtypeStruct((num_tiles, 1, s_pad), jnp.float32),   # struct partials
        ),
        grid_spec=pltpu.PrefetchScalarGridSpec(
            num_scalar_prefetch=0,
            grid=(num_tiles,),
            in_specs=[
                pl.BlockSpec((tm, hidden), lambda i: (i, 0)),            # x tile (natural)
                pl.BlockSpec((d_ff, hidden), lambda i: (0, 0),
                             pipeline_mode=pl.Buffered(1)),              # w1 resident
                pl.BlockSpec((d_ff, 1), lambda i: (0, 0),
                             pipeline_mode=pl.Buffered(1)),              # b1 resident
                pl.BlockSpec((d_ff, 1), lambda i: (0, 0),
                             pipeline_mode=pl.Buffered(1)),              # w2 resident
                pl.BlockSpec(memory_space=pltpu.MemorySpace.SMEM),       # b2 scalar
                pl.BlockSpec((1, tm), lambda i: (0, i)),                 # structure ids
            ],
            out_specs=(
                pl.BlockSpec((1, tm), lambda i: (0, i)),                 # per-atom (lane-dense)
                pl.BlockSpec((1, 1, s_pad), lambda i: (i, 0, 0)),        # struct partial row
            ),
        ),
        compiler_params=pltpu.CompilerParams(
            dimension_semantics=("parallel",),          # shard atom tiles across TCs
            vmem_limit_bytes=vmem_limit,
        ),
    )(x, w1_t, b1_c, w2_c, b2_c, ids)

    per_atom = per_atom_row[0, :n_atoms].reshape(n_atoms, 1)
    per_struct = jnp.sum(struct_partials[:, 0, :], axis=0)[:n_systems]
    return per_atom, per_struct.reshape(n_systems, 1)


if __name__ == "__main__":
    key = jax.random.PRNGKey(0)
    k_emb, k_pos, k_proj, k_w1, k_w2, k_sp = jax.random.split(key, 6)

    # --- small synthetic "systems" batch (glue, mirrors systems_to_batch_dict) ---
    n_systems = 2
    counts = [135, 118]                  # ragged vs the 128-lane tile on purpose
    n_atoms = sum(counts)                # 253
    n_species = 4
    hidden = 128                         # MXU-aligned demo widths
    d_ff = 512

    species = jax.random.randint(k_sp, (n_atoms,), 0, n_species, dtype=jnp.int32)
    positions = jax.random.normal(k_pos, (n_atoms, 3), dtype=jnp.float32)
    batch_ids = jnp.concatenate(
        [jnp.full((c,), i, dtype=jnp.int32) for i, c in enumerate(counts)]
    )

    # --- deterministic parameters (stand-in for PET weights) ---
    emb_table = 0.1 * jax.random.normal(k_emb, (n_species, hidden), dtype=jnp.float32)
    pos_proj = 0.1 * jax.random.normal(k_proj, (3, hidden), dtype=jnp.float32)
    w1 = 0.1 * jax.random.normal(k_w1, (hidden, d_ff), dtype=jnp.float32)
    b1 = jnp.zeros((1, d_ff), dtype=jnp.float32)
    w2 = 0.1 * jax.random.normal(k_w2, (d_ff, 1), dtype=jnp.float32)
    b2 = jnp.zeros((1, 1), dtype=jnp.float32)

    # per-atom input features (embedding gather + position encoding) — JAX glue
    x = emb_table[species] + positions @ pos_proj        # (n_atoms, hidden)

    per_atom, per_struct = pet_forward(x, w1, b1, w2, b2, batch_ids, n_systems)
    per_atom = jax.block_until_ready(per_atom)
    per_struct = jax.block_until_ready(per_struct)

    # correctness check against plain-JAX reference (bf16-rounded GEMM inputs)
    xb = x.astype(jnp.bfloat16).astype(jnp.float32)
    w1b = w1.astype(jnp.bfloat16).astype(jnp.float32)
    h_ref = jax.nn.gelu(xb @ w1b + b1, approximate=True)
    pred_ref = h_ref @ w2 + b2
    struct_ref_v = jax.ops.segment_sum(pred_ref, batch_ids, num_segments=n_systems)

    assert per_atom.shape == (n_atoms, 1) and per_struct.shape == (n_systems, 1)
    assert jnp.allclose(per_atom, pred_ref, atol=5e-3, rtol=5e-3)
    assert jnp.allclose(per_struct, struct_ref_v, atol=5e-2, rtol=2e-2)

    print("KERNEL_OK")
</pallas_src>

<mosaic_0001>
module attributes {stable_mosaic.version = 11 : i64} {
  func.func @pet_head_kernel(%arg0: i32, %arg1: memref<128x128xf32, #tpu.memory_space<vmem>>, %arg2: memref<512x128xbf16, #tpu.memory_space<vmem>>, %arg3: memref<512x1xf32, #tpu.memory_space<vmem>>, %arg4: memref<512x1xf32, #tpu.memory_space<vmem>>, %arg5: memref<1x1xf32, #tpu.memory_space<smem>>, %arg6: memref<1x128xi32, #tpu.memory_space<vmem>>, %arg7: memref<1x128xf32, #tpu.memory_space<vmem>>, %arg8: memref<1x1x128xf32, #tpu.memory_space<vmem>>) attributes {dimension_semantics = [#tpu.dimension_semantics<parallel>], iteration_bounds = array<i64: 2>, scalar_prefetch = 0 : i64, scratch_operands = 0 : i64, tpu.core_type = #tpu.core_type<tc>, window_params = [{transform_indices = @transform_0, window_bounds = array<i64: 128, 128>}, {pipeline_mode = #tpu.pipeline_mode<synchronous>, transform_indices = @transform_1, window_bounds = array<i64: 512, 128>}, {pipeline_mode = #tpu.pipeline_mode<synchronous>, transform_indices = @transform_2, window_bounds = array<i64: 512, 1>}, {pipeline_mode = #tpu.pipeline_mode<synchronous>, transform_indices = @transform_3, window_bounds = array<i64: 512, 1>}, {transform_indices = @transform_4, window_bounds = array<i64: 1, 1>}, {transform_indices = @transform_5, window_bounds = array<i64: 1, 128>}, {transform_indices = @transform_6, window_bounds = array<i64: 1, 128>}, {transform_indices = @transform_7, window_bounds = array<i64: 1, 1, 128>}]} {
    %c0 = arith.constant 0 : index
    %c0_0 = arith.constant 0 : index
    %0 = vector.load %arg1[%c0, %c0_0] : memref<128x128xf32, #tpu.memory_space<vmem>>, vector<128x128xf32>
    %1 = arith.truncf %0 : vector<128x128xf32> to vector<128x128xbf16>
    %cst = arith.constant 0.000000e+00 : f32
    %2 = vector.broadcast %cst : f32 to vector<1x128xf32>
    %c0_1 = arith.constant 0 : index
    %c0_2 = arith.constant 0 : index
    %3 = vector.load %arg2[%c0_1, %c0_2] : memref<512x128xbf16, #tpu.memory_space<vmem>>, vector<512x128xbf16>
    %cst_3 = arith.constant dense<0.000000e+00> : vector<512x128xf32>
    %4 = tpu.matmul %3, %1, %cst_3 {dimension_numbers = #tpu.dot_dimension_numbers<[1], [1], [0], [0], [0, 0, 1, 0], [], []>} : vector<512x128xbf16>, vector<128x128xbf16>, vector<512x128xf32> -> vector<512x128xf32>
    %c0_4 = arith.constant 0 : index
    %c0_5 = arith.constant 0 : index
    %5 = vector.load %arg3[%c0_4, %c0_5] : memref<512x1xf32, #tpu.memory_space<vmem>>, vector<512x1xf32>
    %6 = vector.broadcast %5 : vector<512x1xf32> to vector<512x128xf32>
    %7 = arith.addf %4, %6 : vector<512x128xf32>
    %8 = arith.mulf %7, %7 : vector<512x128xf32>
    %9 = arith.mulf %7, %8 : vector<512x128xf32>
    %cst_6 = arith.constant 4.471500e-02 : f32
    %10 = vector.broadcast %cst_6 : f32 to vector<512x128xf32>
    %11 = arith.mulf %10, %9 : vector<512x128xf32>
    %12 = arith.addf %7, %11 : vector<512x128xf32>
    %cst_7 = arith.constant 0.797884583 : f32
    %13 = vector.broadcast %cst_7 : f32 to vector<512x128xf32>
    %14 = arith.mulf %13, %12 : vector<512x128xf32>
    %15 = math.tanh %14 : vector<512x128xf32>
    %cst_8 = arith.constant 1.000000e+00 : f32
    %16 = vector.broadcast %cst_8 : f32 to vector<512x128xf32>
    %17 = arith.addf %16, %15 : vector<512x128xf32>
    %cst_9 = arith.constant 5.000000e-01 : f32
    %18 = vector.broadcast %cst_9 : f32 to vector<512x128xf32>
    %19 = arith.mulf %18, %17 : vector<512x128xf32>
    %20 = arith.mulf %7, %19 : vector<512x128xf32>
    %c0_10 = arith.constant 0 : index
    %c0_11 = arith.constant 0 : index
    %21 = vector.load %arg4[%c0_10, %c0_11] : memref<512x1xf32, #tpu.memory_space<vmem>>, vector<512x1xf32>
    %22 = vector.broadcast %21 : vector<512x1xf32> to vector<512x128xf32>
    %23 = arith.mulf %20, %22 : vector<512x128xf32>
    %cst_12 = arith.constant dense<0.000000e+00> : vector<128xf32>
    %24 = vector.multi_reduction <add>, %23, %cst_12 [0] : vector<512x128xf32> to vector<128xf32>
    %25 = vector.shape_cast %24 : vector<128xf32> to vector<1x128xf32>
    %26 = arith.addf %2, %25 : vector<1x128xf32>
    %c0_13 = arith.constant 0 : index
    %c0_14 = arith.constant 0 : index
    %27 = vector.load %arg6[%c0_13, %c0_14] : memref<1x128xi32, #tpu.memory_space<vmem>>, vector<1x128xi32>
    %c0_i32 = arith.constant 0 : i32
    %28 = vector.broadcast %c0_i32 : i32 to vector<1x128xi32>
    %29 = arith.cmpi sge, %27, %28 : vector<1x128xi32>
    %c0_15 = arith.constant 0 : index
    %c0_16 = arith.constant 0 : index
    %30 = memref.load %arg5[%c0_15, %c0_16] : memref<1x1xf32, #tpu.memory_space<smem>>
    %31 = vector.broadcast %30 : f32 to vector<1x128xf32>
    %32 = arith.addf %26, %31 : vector<1x128xf32>
    %cst_17 = arith.constant 0.000000e+00 : f32
    %33 = vector.broadcast %cst_17 : f32 to vector<1x128xf32>
    %34 = arith.select %29, %32, %33 : vector<1x128xi1>, vector<1x128xf32>
    %c0_18 = arith.constant 0 : index
    %c0_19 = arith.constant 0 : index
    %35 = vector.load %arg7[%c0_18, %c0_19] : memref<1x128xf32, #tpu.memory_space<vmem>>, vector<1x128xf32>
    tpu.vector_store %arg7[%c0_18, %c0_19], %34 {strides = array<i32>} : memref<1x128xf32, #tpu.memory_space<vmem>>, vector<1x128xf32>,
    %36 = tpu.iota {dimensions = array<i32: 0>} : vector<128x128xi32>
    %37 = vector.broadcast %27 : vector<1x128xi32> to vector<128x128xi32>
    %38 = arith.cmpi eq, %36, %37 : vector<128x128xi32>
    %39 = arith.extui %38 : vector<128x128xi1> to vector<128x128xi32>
    %40 = arith.sitofp %39 : vector<128x128xi32> to vector<128x128xf32>
    %cst_20 = arith.constant dense<0.000000e+00> : vector<1x128xf32>
    %41 = tpu.matmul %34, %40, %cst_20 {dimension_numbers = #tpu.dot_dimension_numbers<[1], [1], [0], [0], [0, 0, 1, 0], [], []>} : vector<1x128xf32>, vector<128x128xf32>, vector<1x128xf32> -> vector<1x128xf32>
    %42 = vector.shape_cast %41 : vector<1x128xf32> to vector<1x1x128xf32>
    %c0_21 = arith.constant 0 : index
    %c0_22 = arith.constant 0 : index
    %c0_23 = arith.constant 0 : index
    %43 = vector.load %arg8[%c0_21, %c0_22, %c0_23] : memref<1x1x128xf32, #tpu.memory_space<vmem>>, vector<1x1x128xf32>
    tpu.vector_store %arg8[%c0_21, %c0_22, %c0_23], %42 {strides = array<i32>} : memref<1x1x128xf32, #tpu.memory_space<vmem>>, vector<1x1x128xf32>,
    return
  }
  func.func @transform_0(%arg0: i32) -> (i32, i32) {
    %c0_i32 = arith.constant 0 : i32
    %c0_i32_0 = arith.constant 0 : i32
    return %arg0, %c0_i32 : i32, i32
  }
  func.func @transform_1(%arg0: i32) -> (i32, i32) {
    %c0_i32 = arith.constant 0 : i32
    %c0_i32_0 = arith.constant 0 : i32
    %c0_i32_1 = arith.constant 0 : i32
    return %c0_i32, %c0_i32_0 : i32, i32
  }
  func.func @transform_2(%arg0: i32) -> (i32, i32) {
    %c0_i32 = arith.constant 0 : i32
    %c0_i32_0 = arith.constant 0 : i32
    %c0_i32_1 = arith.constant 0 : i32
    return %c0_i32, %c0_i32_0 : i32, i32
  }
  func.func @transform_3(%arg0: i32) -> (i32, i32) {
    %c0_i32 = arith.constant 0 : i32
    %c0_i32_0 = arith.constant 0 : i32
    %c0_i32_1 = arith.constant 0 : i32
    return %c0_i32, %c0_i32_0 : i32, i32
  }
  func.func @transform_4(%arg0: i32) -> (i32, i32) {
    %c0_i32 = arith.constant 0 : i32
    %c0_i32_0 = arith.constant 0 : i32
    %c0_i32_1 = arith.constant 0 : i32
    return %c0_i32, %c0_i32_0 : i32, i32
  }
  func.func @transform_5(%arg0: i32) -> (i32, i32) {
    %c0_i32 = arith.constant 0 : i32
    %c0_i32_0 = arith.constant 0 : i32
    return %c0_i32, %arg0 : i32, i32
  }
  func.func @transform_6(%arg0: i32) -> (i32, i32) {
    %c0_i32 = arith.constant 0 : i32
    %c0_i32_0 = arith.constant 0 : i32
    return %c0_i32, %arg0 : i32, i32
  }
  func.func @transform_7(%arg0: i32) -> (i32, i32, i32) {
    %c0_i32 = arith.constant 0 : i32
    %c0_i32_0 = arith.constant 0 : i32
    %c0_i32_1 = arith.constant 0 : i32
    return %arg0, %c0_i32, %c0_i32_0 : i32, i32, i32
  }
}

</mosaic_0001>

<llo_original>
// kernel: tpu_custom_call.1
$region0: #{tpu_custom_call.1}
  #allocation0 [shape = 'u32[]', space=smem, size = 0x4, offset = 0x4, fixed_abs, tag = 'smem constant byte address 0x4 - core index']
  #allocation1 [shape = 'u32[72,128]{1,0:T(1,128)}', space=vmem, size = 0x9000, scoped, tag = 'internal scratch']
  #allocation2 [shape = 'f32[1,1]{1,0:T(1,128)S(6)}', space=smem, size = 0x200, scoped, tag = 'scoped memory for tpu_custom_call.1']
  %s0 = inlined_call_operand.vmem [shape: f32[253,128], index: 0, kind: input, shape index: {}]
  %s1 = inlined_call_operand.vmem [shape: bf16[512,128], index: 1, kind: input, shape index: {}]
  %s2 = inlined_call_operand.vmem [shape: f32[512,1], index: 2, kind: input, shape index: {}]
  %s3 = inlined_call_operand.vmem [shape: f32[512,1], index: 3, kind: input, shape index: {}]
  %s4 = inlined_call_operand.<no memory space> [shape: f32[1,1], index: 4, kind: input, shape index: {}]
  %s5 = inlined_call_operand.vmem [shape: s32[1,256], index: 5, kind: input, shape index: {}]
  %s6 = inlined_call_operand.hbm [shape: f32[1,256], index: 6, kind: output, shape index: {0}]
  %s7 = inlined_call_operand.hbm [shape: f32[2,1,128], index: 7, kind: output, shape index: {1}]
  %8 = xla_tuple %s6, %s7
  %s9 = sld [smem:[#allocation0]]
  $region65: #{tpu_custom_call.1} parent=0
    _
  %s11 = ssub.s32 1, %s9
  %s12 = scalar_select 0, %s11, %s9
  %13 = sst [smem:[#allocation2]] %s4
  $region1: #{tpu_custom_call.1} parent=0
    #allocation3 [shape = 'u8[1024]{0}', space=vmem, size = 0x400, scoped, tag = 'output window, operand 0']
    #allocation4 [shape = 's32[2]{0}', space=sflag, size = 0x8, scoped, tag = 'scoped memory for tpu_custom_call.1']
    #allocation5 [shape = 'u8[1024]{0}', space=vmem, size = 0x400, scoped, tag = 'output window, operand 1']
    #allocation6 [shape = 's32[2]{0}', space=sflag, size = 0x8, scoped, tag = 'scoped memory for tpu_custom_call.1']
    %14 = vsyncpa [#allocation4], 0
    %s15 = scalar_lea.sflag [#allocation4], 1
    %16 = vsyncpa %s15, 0
    %17 = vsyncpa [#allocation6], 0
    %s18 = scalar_lea.sflag [#allocation6], 1
    %19 = vsyncpa %s18, 0
    loop: start=0, step=1, limit=4
    $region2: #{tpu_custom_call.1} parent=1 // loop_pre_header
      _
    $region3: #{tpu_custom_call.1} parent=1 // loop_header
      %s21 = sphi 0, %s25
      %p22 = scmp.ge.s32.totalorder %s21, 4
      %s31 = sphi 0, %s33
      %s34 = sphi 0, %s31
      %s35 = sphi 0, %s34
      %s51 = sphi 0, %s35
      %s55 = sphi 0, %s55
      %s57 = sphi 0, %s55
      %s58 = sphi 0, %s57
      %s72 = sphi 0, %s58
      %s76 = sphi 0, %s76
      %s78 = sphi 0, %s76
      %s79 = sphi 0, %s78
      %s93 = sphi 0, %s79
      %s97 = sphi 0, %s97
      %s99 = sphi 0, %s97
      %s100 = sphi 0, %s99
      %s114 = sphi 0, %s100
      %s118 = sphi 0, %s118
      %s120 = sphi 0, %s118
      %s121 = sphi 0, %s120
      %s135 = sphi 0, %s121
      %s141 = sphi 0, %s143
      %s144 = sphi 0, %s141
      %s145 = sphi 0, %s144
      %s161 = sphi 0, %s145
      %s167 = sphi 0, %s169
      %s170 = sphi 0, %s167
      %s171 = sphi 0, %s170
      %s187 = sphi 0, %s171
      %s193 = sphi 0, %s195
      %s196 = sphi 0, %s193
      %s197 = sphi 0, %s196
      %s213 = sphi 0, %s197
    $region4: #{tpu_custom_call.1} parent=1 // loop_header_branch
      %24 = sbr.rel (%p22) target = $region8
    $region5: #{tpu_custom_call.1} parent=1 // loop_body
      %s26 = ssub.s32 %s21, 1
      %s27 = ssub.s32 %s21, 2
      %s28 = sadd.s32 %s21, 1
      %s29 = ssub.s32 %s21, %s28
      %p30 = scmp.eq.s32.totalorder %s29, 0
      %s32 = sadd.s32 %s31, 1
      %s33 = scalar_select %p30, %s31, %s32
      %p36 = pneg %p30
      %p37 = scmp.eq.s32.totalorder %s21, 1
      %p38 = por %p36, %p37
      %p39 = scmp.ne.s32.totalorder %s31, %s34
      %p40 = scmp.eq.s32.totalorder %s21, 0
      %p41 = por %p39, %p40
      %p42 = scmp.ne.s32.totalorder %s31, %s34
      %p43 = scmp.eq.s32.totalorder %s26, 1
      %p44 = por %p42, %p43
      %p45 = scmp.ne.s32.totalorder %s34, %s35
      %p46 = scmp.eq.s32.totalorder %s26, 0
      %p47 = por %p45, %p46
      %p48 = scmp.ne.s32.totalorder %s34, %s35
      %p49 = scmp.eq.s32.totalorder %s27, 1
      %p50 = por %p48, %p49
      %p52 = scmp.ne.s32.totalorder %s35, %s51
      %p53 = scmp.eq.s32.totalorder %s27, 0
      %p54 = por %p52, %p53
      %s56 = sadd.s32 %s55, 1
      %p59 = scmp.eq.s32.totalorder %s21, 1
      %p60 = scmp.ne.s32.totalorder %s55, %s57
      %p61 = scmp.eq.s32.totalorder %s21, 0
      %p62 = por %p60, %p61
      %p63 = scmp.ne.s32.totalorder %s55, %s57
      %p64 = scmp.eq.s32.totalorder %s26, 1
      %p65 = por %p63, %p64
      %p66 = scmp.ne.s32.totalorder %s57, %s58
      %p67 = scmp.eq.s32.totalorder %s26, 0
      %p68 = por %p66, %p67
      %p69 = scmp.ne.s32.totalorder %s57, %s58
      %p70 = scmp.eq.s32.totalorder %s27, 1
      %p71 = por %p69, %p70
      %p73 = scmp.ne.s32.totalorder %s58, %s72
      %p74 = scmp.eq.s32.totalorder %s27, 0
      %p75 = por %p73, %p74
      %s77 = sadd.s32 %s76, 1
      %p80 = scmp.eq.s32.totalorder %s21, 1
      %p81 = scmp.ne.s32.totalorder %s76, %s78
      %p82 = scmp.eq.s32.totalorder %s21, 0
      %p83 = por %p81, %p82
      %p84 = scmp.ne.s32.totalorder %s76, %s78
      %p85 = scmp.eq.s32.totalorder %s26, 1
      %p86 = por %p84, %p85
      %p87 = scmp.ne.s32.totalorder %s78, %s79
      %p88 = scmp.eq.s32.totalorder %s26, 0
      %p89 = por %p87, %p88
      %p90 = scmp.ne.s32.totalorder %s78, %s79
      %p91 = scmp.eq.s32.totalorder %s27, 1
      %p92 = por %p90, %p91
      %p94 = scmp.ne.s32.totalorder %s79, %s93
      %p95 = scmp.eq.s32.totalorder %s27, 0
      %p96 = por %p94, %p95
      %s98 = sadd.s32 %s97, 1
      %p101 = scmp.eq.s32.totalorder %s21, 1
      %p102 = scmp.ne.s32.totalorder %s97, %s99
      %p103 = scmp.eq.s32.totalorder %s21, 0
      %p104 = por %p102, %p103
      %p105 = scmp.ne.s32.totalorder %s97, %s99
      %p106 = scmp.eq.s32.totalorder %s26, 1
      %p107 = por %p105, %p106
      %p108 = scmp.ne.s32.totalorder %s99, %s100
      %p109 = scmp.eq.s32.totalorder %s26, 0
      %p110 = por %p108, %p109
      %p111 = scmp.ne.s32.totalorder %s99, %s100
      %p112 = scmp.eq.s32.totalorder %s27, 1
      %p113 = por %p111, %p112
      %p115 = scmp.ne.s32.totalorder %s100, %s114
      %p116 = scmp.eq.s32.totalorder %s27, 0
      %p117 = por %p115, %p116
      %s119 = sadd.s32 %s118, 1
      %p122 = scmp.eq.s32.totalorder %s21, 1
      %p123 = scmp.ne.s32.totalorder %s118, %s120
      %p124 = scmp.eq.s32.totalorder %s21, 0
      %p125 = por %p123, %p124
      %p126 = scmp.ne.s32.totalorder %s118, %s120
      %p127 = scmp.eq.s32.totalorder %s26, 1
      %p128 = por %p126, %p127
      %p129 = scmp.ne.s32.totalorder %s120, %s121
      %p130 = scmp.eq.s32.totalorder %s26, 0
      %p131 = por %p129, %p130
      %p132 = scmp.ne.s32.totalorder %s120, %s121
      %p133 = scmp.eq.s32.totalorder %s27, 1
      %p134 = por %p132, %p133
      %p136 = scmp.ne.s32.totalorder %s121, %s135
      %p137 = scmp.eq.s32.totalorder %s27, 0
      %p138 = por %p136, %p137
      %s139 = ssub.s32 %s21, %s28
      %p140 = scmp.eq.s32.totalorder %s139, 0
      %s142 = sadd.s32 %s141, 1
      %s143 = scalar_select %p140, %s141, %s142
      %p146 = pneg %p140
      %p147 = scmp.eq.s32.totalorder %s21, 1
      %p148 = por %p146, %p147
      %p149 = scmp.ne.s32.totalorder %s141, %s144
      %p150 = scmp.eq.s32.totalorder %s21, 0
      %p151 = por %p149, %p150
      %p152 = scmp.ne.s32.totalorder %s141, %s144
      %p153 = scmp.eq.s32.totalorder %s26, 1
      %p154 = por %p152, %p153
      %p155 = scmp.ne.s32.totalorder %s144, %s145
      %p156 = scmp.eq.s32.totalorder %s26, 0
      %p157 = por %p155, %p156
      %p158 = scmp.ne.s32.totalorder %s144, %s145
      %p159 = scmp.eq.s32.totalorder %s27, 1
      %p160 = por %p158, %p159
      %p162 = scmp.ne.s32.totalorder %s145, %s161
      %p163 = scmp.eq.s32.totalorder %s27, 0
      %p164 = por %p162, %p163
      %s165 = ssub.s32 %s21, %s28
      %p166 = scmp.eq.s32.totalorder %s165, 0
      %s168 = sadd.s32 %s167, 1
      %s169 = scalar_select %p166, %s167, %s168
      %p172 = pneg %p166
      %p173 = scmp.eq.s32.totalorder %s21, 1
      %p174 = por %p172, %p173
      %p175 = scmp.ne.s32.totalorder %s167, %s170
      %p176 = scmp.eq.s32.totalorder %s21, 0
      %p177 = por %p175, %p176
      %p178 = scmp.ne.s32.totalorder %s167, %s170
      %p179 = scmp.eq.s32.totalorder %s26, 1
      %p180 = por %p178, %p179
      %p181 = scmp.ne.s32.totalorder %s170, %s171
      %p182 = scmp.eq.s32.totalorder %s26, 0
      %p183 = por %p181, %p182
      %p184 = scmp.ne.s32.totalorder %s170, %s171
      %p185 = scmp.eq.s32.totalorder %s27, 1
      %p186 = por %p184, %p185
      %p188 = scmp.ne.s32.totalorder %s171, %s187
      %p189 = scmp.eq.s32.totalorder %s27, 0
      %p190 = por %p188, %p189
      %s191 = ssub.s32 %s21, %s28
      %p192 = scmp.eq.s32.totalorder %s191, 0
      %s194 = sadd.s32 %s193, 1
      %s195 = scalar_select %p192, %s193, %s194
      %p198 = pneg %p192
      %p199 = scmp.eq.s32.totalorder %s21, 1
      %p200 = por %p198, %p199
      %p201 = scmp.ne.s32.totalorder %s193, %s196
      %p202 = scmp.eq.s32.totalorder %s21, 0
      %p203 = por %p201, %p202
      %p204 = scmp.ne.s32.totalorder %s193, %s196
      %p205 = scmp.eq.s32.totalorder %s26, 1
      %p206 = por %p204, %p205
      %p207 = scmp.ne.s32.totalorder %s196, %s197
      %p208 = scmp.eq.s32.totalorder %s26, 0
      %p209 = por %p207, %p208
      %p210 = scmp.ne.s32.totalorder %s196, %s197
      %p211 = scmp.eq.s32.totalorder %s27, 1
      %p212 = por %p210, %p211
      %p214 = scmp.ne.s32.totalorder %s197, %s213
      %p215 = scmp.eq.s32.totalorder %s27, 0
      %p216 = por %p214, %p215
      %p217 = scmp.le.s32.totalorder 1, %s21
      %p218 = scmp.lt.s32.totalorder %s21, 3
      %p219 = pnand %p217, %p218
      %p220 = pneg %p219
      // Predicated region
      $region9: #{tpu_custom_call.1} parent=5 // pred_check
        _
      $region10: #{tpu_custom_call.1} parent=5 // pred_check_branch
        %222 = sbr.rel (%p219) target = $region12
      $region11: #{tpu_custom_call.1} parent=5 // pred_region
        %s223 = ssub.s32 %s21, 1
        // Predicated region
        $region13: #{tpu_custom_call.1} parent=11 // pred_check
          %p224 = pneg %p68
        $region14: #{tpu_custom_call.1} parent=11 // pred_check_branch
          %226 = sbr.rel (%p224) target = $region16
        $region15: #{tpu_custom_call.1} parent=11 // pred_region
          _
        $region16: #{tpu_custom_call.1} parent=11 // pred_fallthru
          _
        // Predicated region
        $region17: #{tpu_custom_call.1} parent=11 // pred_check
          %p227 = pneg %p89
        $region18: #{tpu_custom_call.1} parent=11 // pred_check_branch
          %229 = sbr.rel (%p227) target = $region20
        $region19: #{tpu_custom_call.1} parent=11 // pred_region
          _
        $region20: #{tpu_custom_call.1} parent=11 // pred_fallthru
          _
        // Predicated region
        $region21: #{tpu_custom_call.1} parent=11 // pred_check
          %p230 = pneg %p110
        $region22: #{tpu_custom_call.1} parent=11 // pred_check_branch
          %232 = sbr.rel (%p230) target = $region24
        $region23: #{tpu_custom_call.1} parent=11 // pred_region
          _
        $region24: #{tpu_custom_call.1} parent=11 // pred_fallthru
          _
        // Predicated region
        $region25: #{tpu_custom_call.1} parent=11 // pred_check
          %p233 = pneg %p131
        $region26: #{tpu_custom_call.1} parent=11 // pred_check_branch
          %235 = sbr.rel (%p233) target = $region28
        $region27: #{tpu_custom_call.1} parent=11 // pred_region
          _
        $region28: #{tpu_custom_call.1} parent=11 // pred_fallthru
          _
      $region12: #{tpu_custom_call.1} parent=5 // pred_fallthru
        _
      %p236 = scmp.lt.s32.totalorder %s21, 2
      // Predicated region
      $region29: #{tpu_custom_call.1} parent=5 // pred_check
        %p237 = pneg %p236
      $region30: #{tpu_custom_call.1} parent=5 // pred_check_branch
        %239 = sbr.rel (%p237) target = $region32
      $region31: #{tpu_custom_call.1} parent=5 // pred_region
        // Predicated region
        $region33: #{tpu_custom_call.1} parent=31 // pred_check
          %p240 = pneg %p41
        $region34: #{tpu_custom_call.1} parent=31 // pred_check_branch
          %242 = sbr.rel (%p240) target = $region36
        $region35: #{tpu_custom_call.1} parent=31 // pred_region
          %s243 = smul.u32 16, %s21
          %p244 = scmp.lt.s32.totalorder %s243, 31
          %s245 = scalar_select %p244, %s243, 31
          %s246 = smul.addr %s245, 8
          %s247 = scalar_lea.vmem %s0, %s246
          %s248 = smul.u32 16, %s21
        $region36: #{tpu_custom_call.1} parent=31 // pred_fallthru
          _
        // Predicated region
        $region37: #{tpu_custom_call.1} parent=31 // pred_check
          %p249 = pneg %p151
        $region38: #{tpu_custom_call.1} parent=31 // pred_check_branch
          %251 = sbr.rel (%p249) target = $region40
        $region39: #{tpu_custom_call.1} parent=31 // pred_region
          %p252 = scmp.lt.s32.totalorder %s21, 1
          %s253 = scalar_select %p252, %s21, 1
          %s254 = scalar_lea.vmem %s5, %s253
        $region40: #{tpu_custom_call.1} parent=31 // pred_fallthru
          _
      $region32: #{tpu_custom_call.1} parent=5 // pred_fallthru
        _
      %p255 = scmp.le.s32.totalorder 1, %s21
      %p256 = scmp.lt.s32.totalorder %s21, 3
      %p257 = pnand %p255, %p256
      %p258 = pneg %p257
      // Predicated region
      $region41: #{tpu_custom_call.1} parent=5 // pred_check
        _
      $region42: #{tpu_custom_call.1} parent=5 // pred_check_branch
        %260 = sbr.rel (%p257) target = $region44
      $region43: #{tpu_custom_call.1} parent=5 // pred_region
        %s261 = ssub.s32 %s21, 1
        %s262 = smul.u32 16, %s26
        %p263 = scmp.lt.s32.totalorder %s262, 31
        %s264 = scalar_select %p263, %s262, 31
        %s265 = smul.addr %s264, 8
        %s266 = scalar_lea.vmem %s0, %s265
        %p267 = pneg %p47
        %p268 = pneg %p44
        %p269 = pneg %p68
        %p270 = pneg %p65
        %p271 = pneg %p89
        %p272 = pneg %p86
        %p273 = pneg %p110
        %p274 = pneg %p107
        %p275 = pneg %p131
        %p276 = pneg %p128
        %p277 = scmp.lt.s32.totalorder %s26, 1
        %s278 = scalar_select %p277, %s26, 1
        %s279 = scalar_lea.vmem %s5, %s278
        %p280 = pneg %p157
        %p281 = pneg %p154
        %p282 = pneg %p183
        %p283 = pneg %p180
        %s284 = sand.u32 %s170, 1
        %s285 = scalar_lea.sflag [#allocation4], %s284
        %s286 = sand.u32 %s170, 1
        %s287 = scalar_lea.vmem [#allocation3], %s286
        %p288 = pneg %p209
        %p289 = pneg %p206
        %s290 = sand.u32 %s196, 1
        %s291 = scalar_lea.sflag [#allocation6], %s290
        %s292 = sand.u32 %s196, 1
        %s293 = scalar_lea.vmem [#allocation5], %s292
        %s294 = smul.u32 16, %s26
        %p295 = scmp.lt.s32.totalorder %s294, 31
        %s296 = scalar_select %p295, %s294, 31
        %s297 = smul.addr %s296, 8
        %s298 = scalar_lea.vmem %s0, %s297
        %s299 = smul.u32 16, %s26
        %p300 = scmp.lt.s32.totalorder %s26, 1
        %s301 = scalar_select %p300, %s26, 1
        %s302 = scalar_lea.vmem %s5, %s301
        %v303 = vld [vmem:[%s298] sm:$0xff]
        %v304 = vld [vmem:[%s298 + $0x8] sm:$0xff]
        %v305 = vld [vmem:[%s298 + $0x10] sm:$0xff]
        %v306 = vld [vmem:[%s298 + $0x18] sm:$0xff]
        %v307 = vld [vmem:[%s298 + $0x20] sm:$0xff]
        %v308 = vld [vmem:[%s298 + $0x28] sm:$0xff]
        %v309 = vld [vmem:[%s298 + $0x30] sm:$0xff]
        %v310 = vld [vmem:[%s298 + $0x38] sm:$0xff]
        %v311 = vld [vmem:[%s298 + $0x40] sm:$0xff]
        %v312 = vld [vmem:[%s298 + $0x48] sm:$0xff]
        %v313 = vld [vmem:[%s298 + $0x50] sm:$0xff]
        %v314 = vld [vmem:[%s298 + $0x58] sm:$0xff]
        %v315 = vld [vmem:[%s298 + $0x60] sm:$0xff]
        %v316 = vld [vmem:[%s298 + $0x68] sm:$0xff]
        %v317 = vld [vmem:[%s298 + $0x70] sm:$0xff]
        %v318 = vld [vmem:[%s298 + $0x78] sm:$0xff]
        %v319 = vpack.c.bf16 %v304, %v303
        %v320 = vpack.c.bf16 %v306, %v305
        %v321 = vpack.c.bf16 %v308, %v307
        %v322 = vpack.c.bf16 %v310, %v309
        %v323 = vpack.c.bf16 %v312, %v311
        %v324 = vpack.c.bf16 %v314, %v313
        %v325 = vpack.c.bf16 %v316, %v315
        %v326 = vpack.c.bf16 %v318, %v317
        %v327 = vld [vmem:[%s1] sm:$0xf]
        %v328 = vld [vmem:[%s1 + $0x4] sm:$0xf]
        %v329 = vld [vmem:[%s1 + $0x8] sm:$0xf]
        %v330 = vld [vmem:[%s1 + $0xc] sm:$0xf]
        %v331 = vld [vmem:[%s1 + $0x10] sm:$0xf]
        %v332 = vld [vmem:[%s1 + $0x14] sm:$0xf]
        %v333 = vld [vmem:[%s1 + $0x18] sm:$0xf]
        %v334 = vld [vmem:[%s1 + $0x1c] sm:$0xf]
        %v335 = vld [vmem:[%s1 + $0x20] sm:$0xf]
        %v336 = vld [vmem:[%s1 + $0x24] sm:$0xf]
        %v337 = vld [vmem:[%s1 + $0x28] sm:$0xf]
        %v338 = vld [vmem:[%s1 + $0x2c] sm:$0xf]
        %v339 = vld [vmem:[%s1 + $0x30] sm:$0xf]
        %v340 = vld [vmem:[%s1 + $0x34] sm:$0xf]
        %v341 = vld [vmem:[%s1 + $0x38] sm:$0xf]
        %v342 = vld [vmem:[%s1 + $0x3c] sm:$0xf]
        %v343 = vld [vmem:[%s1 + $0x40] sm:$0xf]
        %v344 = vld [vmem:[%s1 + $0x44] sm:$0xf]
        %v345 = vld [vmem:[%s1 + $0x48] sm:$0xf]
        %v346 = vld [vmem:[%s1 + $0x4c] sm:$0xf]
        %v347 = vld [vmem:[%s1 + $0x50] sm:$0xf]
        %v348 = vld [vmem:[%s1 + $0x54] sm:$0xf]
        %v349 = vld [vmem:[%s1 + $0x58] sm:$0xf]
        %v350 = vld [vmem:[%s1 + $0x5c] sm:$0xf]
        %v351 = vld [vmem:[%s1 + $0x60] sm:$0xf]
        %v352 = vld [vmem:[%s1 + $0x64] sm:$0xf]
        %v353 = vld [vmem:[%s1 + $0x68] sm:$0xf]
        %v354 = vld [vmem:[%s1 + $0x6c] sm:$0xf]
        %v355 = vld [vmem:[%s1 + $0x70] sm:$0xf]
        %v356 = vld [vmem:[%s1 + $0x74] sm:$0xf]
        %v357 = vld [vmem:[%s1 + $0x78] sm:$0xf]
        %v358 = vld [vmem:[%s1 + $0x7c] sm:$0xf]
        %v359 = vld [vmem:[%s1 + $0x80] sm:$0xf]
        %v360 = vld [vmem:[%s1 + $0x84] sm:$0xf]
        %v361 = vld [vmem:[%s1 + $0x88] sm:$0xf]
        %v362 = vld [vmem:[%s1 + $0x8c] sm:$0xf]
        %v363 = vld [vmem:[%s1 + $0x90] sm:$0xf]
        %v364 = vld [vmem:[%s1 + $0x94] sm:$0xf]
        %v365 = vld [vmem:[%s1 + $0x98] sm:$0xf]
        %v366 = vld [vmem:[%s1 + $0x9c] sm:$0xf]
        %v367 = vld [vmem:[%s1 + $0xa0] sm:$0xf]
        %v368 = vld [vmem:[%s1 + $0xa4] sm:$0xf]
        %v369 = vld [vmem:[%s1 + $0xa8] sm:$0xf]
        %v370 = vld [vmem:[%s1 + $0xac] sm:$0xf]
        %v371 = vld [vmem:[%s1 + $0xb0] sm:$0xf]
        %v372 = vld [vmem:[%s1 + $0xb4] sm:$0xf]
        %v373 = vld [vmem:[%s1 + $0xb8] sm:$0xf]
        %v374 = vld [vmem:[%s1 + $0xbc] sm:$0xf]
        %v375 = vld [vmem:[%s1 + $0xc0] sm:$0xf]
        %v376 = vld [vmem:[%s1 + $0xc4] sm:$0xf]
        %v377 = vld [vmem:[%s1 + $0xc8] sm:$0xf]
        %v378 = vld [vmem:[%s1 + $0xcc] sm:$0xf]
        %v379 = vld [vmem:[%s1 + $0xd0] sm:$0xf]
        %v380 = vld [vmem:[%s1 + $0xd4] sm:$0xf]
        %v381 = vld [vmem:[%s1 + $0xd8] sm:$0xf]
        %v382 = vld [vmem:[%s1 + $0xdc] sm:$0xf]
        %v383 = vld [vmem:[%s1 + $0xe0] sm:$0xf]
        %v384 = vld [vmem:[%s1 + $0xe4] sm:$0xf]
        %v385 = vld [vmem:[%s1 + $0xe8] sm:$0xf]
        %v386 = vld [vmem:[%s1 + $0xec] sm:$0xf]
        %v387 = vld [vmem:[%s1 + $0xf0] sm:$0xf]
        %v388 = vld [vmem:[%s1 + $0xf4] sm:$0xf]
        %v389 = vld [vmem:[%s1 + $0xf8] sm:$0xf]
        %v390 = vld [vmem:[%s1 + $0xfc] sm:$0xf]
        %v391 = vld [vmem:[%s2] sm:$0xff]
        %v392 = vld [vmem:[%s2 + $0x8] sm:$0xff]
        %v393 = vld [vmem:[%s2 + $0x10] sm:$0xff]
        %v394 = vld [vmem:[%s2 + $0x18] sm:$0xff]
        %v395 = vld [vmem:[%s2 + $0x20] sm:$0xff]
        %v396 = vld [vmem:[%s2 + $0x28] sm:$0xff]
        %v397 = vld [vmem:[%s2 + $0x30] sm:$0xff]
        %v398 = vld [vmem:[%s2 + $0x38] sm:$0xff]
        %v399 = vld [vmem:[%s2 + $0x40] sm:$0xff]
        %v400 = vld [vmem:[%s2 + $0x48] sm:$0xff]
        %v401 = vld [vmem:[%s2 + $0x50] sm:$0xff]
        %v402 = vld [vmem:[%s2 + $0x58] sm:$0xff]
        %v403 = vld [vmem:[%s2 + $0x60] sm:$0xff]
        %v404 = vld [vmem:[%s2 + $0x68] sm:$0xff]
        %v405 = vld [vmem:[%s2 + $0x70] sm:$0xff]
        %v406 = vld [vmem:[%s2 + $0x78] sm:$0xff]
        %v407 = vld [vmem:[%s2 + $0x80] sm:$0xff]
        %v408 = vld [vmem:[%s2 + $0x88] sm:$0xff]
        %v409 = vld [vmem:[%s2 + $0x90] sm:$0xff]
        %v410 = vld [vmem:[%s2 + $0x98] sm:$0xff]
        %v411 = vld [vmem:[%s2 + $0xa0] sm:$0xff]
        %v412 = vld [vmem:[%s2 + $0xa8] sm:$0xff]
        %v413 = vld [vmem:[%s2 + $0xb0] sm:$0xff]
        %v414 = vld [vmem:[%s2 + $0xb8] sm:$0xff]
        %v415 = vld [vmem:[%s2 + $0xc0] sm:$0xff]
        %v416 = vld [vmem:[%s2 + $0xc8] sm:$0xff]
        %v417 = vld [vmem:[%s2 + $0xd0] sm:$0xff]
        %v418 = vld [vmem:[%s2 + $0xd8] sm:$0xff]
        %v419 = vld [vmem:[%s2 + $0xe0] sm:$0xff]
        %v420 = vld [vmem:[%s2 + $0xe8] sm:$0xff]
        %v421 = vld [vmem:[%s2 + $0xf0] sm:$0xff]
        %v422 = vld [vmem:[%s2 + $0xf8] sm:$0xff]
        %v423 = vld [vmem:[%s2 + $0x100] sm:$0xff]
        %v424 = vld [vmem:[%s2 + $0x108] sm:$0xff]
        %v425 = vld [vmem:[%s2 + $0x110] sm:$0xff]
        %v426 = vld [vmem:[%s2 + $0x118] sm:$0xff]
        %v427 = vld [vmem:[%s2 + $0x120] sm:$0xff]
        %v428 = vld [vmem:[%s2 + $0x128] sm:$0xff]
        %v429 = vld [vmem:[%s2 + $0x130] sm:$0xff]
        %v430 = vld [vmem:[%s2 + $0x138] sm:$0xff]
        %v431 = vld [vmem:[%s2 + $0x140] sm:$0xff]
        %v432 = vld [vmem:[%s2 + $0x148] sm:$0xff]
        %v433 = vld [vmem:[%s2 + $0x150] sm:$0xff]
        %v434 = vld [vmem:[%s2 + $0x158] sm:$0xff]
        %v435 = vld [vmem:[%s2 + $0x160] sm:$0xff]
        %v436 = vld [vmem:[%s2 + $0x168] sm:$0xff]
        %v437 = vld [vmem:[%s2 + $0x170] sm:$0xff]
        %v438 = vld [vmem:[%s2 + $0x178] sm:$0xff]
        %v439 = vld [vmem:[%s2 + $0x180] sm:$0xff]
        %v440 = vld [vmem:[%s2 + $0x188] sm:$0xff]
        %v441 = vld [vmem:[%s2 + $0x190] sm:$0xff]
        %v442 = vld [vmem:[%s2 + $0x198] sm:$0xff]
        %v443 = vld [vmem:[%s2 + $0x1a0] sm:$0xff]
        %v444 = vld [vmem:[%s2 + $0x1a8] sm:$0xff]
        %v445 = vld [vmem:[%s2 + $0x1b0] sm:$0xff]
        %v446 = vld [vmem:[%s2 + $0x1b8] sm:$0xff]
        %v447 = vld [vmem:[%s2 + $0x1c0] sm:$0xff]
        %v448 = vld [vmem:[%s2 + $0x1c8] sm:$0xff]
        %v449 = vld [vmem:[%s2 + $0x1d0] sm:$0xff]
        %v450 = vld [vmem:[%s2 + $0x1d8] sm:$0xff]
        %v451 = vld [vmem:[%s2 + $0x1e0] sm:$0xff]
        %v452 = vld [vmem:[%s2 + $0x1e8] sm:$0xff]
        %v453 = vld [vmem:[%s2 + $0x1f0] sm:$0xff]
        %v454 = vld [vmem:[%s2 + $0x1f8] sm:$0xff]
        %456 = vset.pattern.permute.xlu0 0
        %457 = vperm.xlu0 %456, %v391
        %v458 = vpop.permute.xlu0 %457
        %461 = vset.pattern.permute.xlu0 0
        %462 = vperm.xlu0 %461, %v392
        %v463 = vpop.permute.xlu0 %462
        %466 = vset.pattern.permute.xlu0 0
        %467 = vperm.xlu0 %466, %v393
        %v468 = vpop.permute.xlu0 %467
        %471 = vset.pattern.permute.xlu0 0
        %472 = vperm.xlu0 %471, %v394
        %v473 = vpop.permute.xlu0 %472
        %476 = vset.pattern.permute.xlu0 0
        %477 = vperm.xlu0 %476, %v395
        %v478 = vpop.permute.xlu0 %477
        %481 = vset.pattern.permute.xlu0 0
        %482 = vperm.xlu0 %481, %v396
        %v483 = vpop.permute.xlu0 %482
        %486 = vset.pattern.permute.xlu0 0
        %487 = vperm.xlu0 %486, %v397
        %v488 = vpop.permute.xlu0 %487
        %491 = vset.pattern.permute.xlu0 0
        %492 = vperm.xlu0 %491, %v398
        %v493 = vpop.permute.xlu0 %492
        %496 = vset.pattern.permute.xlu0 0
        %497 = vperm.xlu0 %496, %v399
        %v498 = vpop.permute.xlu0 %497
        %501 = vset.pattern.permute.xlu0 0
        %502 = vperm.xlu0 %501, %v400
        %v503 = vpop.permute.xlu0 %502
        %506 = vset.pattern.permute.xlu0 0
        %507 = vperm.xlu0 %506, %v401
        %v508 = vpop.permute.xlu0 %507
        %511 = vset.pattern.permute.xlu0 0
        %512 = vperm.xlu0 %511, %v402
        %v513 = vpop.permute.xlu0 %512
        %516 = vset.pattern.permute.xlu0 0
        %517 = vperm.xlu0 %516, %v403
        %v518 = vpop.permute.xlu0 %517
        %521 = vset.pattern.permute.xlu0 0
        %522 = vperm.xlu0 %521, %v404
        %v523 = vpop.permute.xlu0 %522
        %526 = vset.pattern.permute.xlu0 0
        %527 = vperm.xlu0 %526, %v405
        %v528 = vpop.permute.xlu0 %527
        %531 = vset.pattern.permute.xlu0 0
        %532 = vperm.xlu0 %531, %v406
        %v533 = vpop.permute.xlu0 %532
        %536 = vset.pattern.permute.xlu0 0
        %537 = vperm.xlu0 %536, %v407
        %v538 = vpop.permute.xlu0 %537
        %541 = vset.pattern.permute.xlu0 0
        %542 = vperm.xlu0 %541, %v408
        %v543 = vpop.permute.xlu0 %542
        %546 = vset.pattern.permute.xlu0 0
        %547 = vperm.xlu0 %546, %v409
        %v548 = vpop.permute.xlu0 %547
        %551 = vset.pattern.permute.xlu0 0
        %552 = vperm.xlu0 %551, %v410
        %v553 = vpop.permute.xlu0 %552
        %556 = vset.pattern.permute.xlu0 0
        %557 = vperm.xlu0 %556, %v411
        %v558 = vpop.permute.xlu0 %557
        %561 = vset.pattern.permute.xlu0 0
        %562 = vperm.xlu0 %561, %v412
        %v563 = vpop.permute.xlu0 %562
        %566 = vset.pattern.permute.xlu0 0
        %567 = vperm.xlu0 %566, %v413
        %v568 = vpop.permute.xlu0 %567
        %571 = vset.pattern.permute.xlu0 0
        %572 = vperm.xlu0 %571, %v414
        %v573 = vpop.permute.xlu0 %572
        %576 = vset.pattern.permute.xlu0 0
        %577 = vperm.xlu0 %576, %v415
        %v578 = vpop.permute.xlu0 %577
        %581 = vset.pattern.permute.xlu0 0
        %582 = vperm.xlu0 %581, %v416
        %v583 = vpop.permute.xlu0 %582
        %586 = vset.pattern.permute.xlu0 0
        %587 = vperm.xlu0 %586, %v417
        %v588 = vpop.permute.xlu0 %587
        %591 = vset.pattern.permute.xlu0 0
        %592 = vperm.xlu0 %591, %v418
        %v593 = vpop.permute.xlu0 %592
        %596 = vset.pattern.permute.xlu0 0
        %597 = vperm.xlu0 %596, %v419
        %v598 = vpop.permute.xlu0 %597
        %601 = vset.pattern.permute.xlu0 0
        %602 = vperm.xlu0 %601, %v420
        %v603 = vpop.permute.xlu0 %602
        %606 = vset.pattern.permute.xlu0 0
        %607 = vperm.xlu0 %606, %v421
        %v608 = vpop.permute.xlu0 %607
        %611 = vset.pattern.permute.xlu0 0
        %612 = vperm.xlu0 %611, %v422
        %v613 = vpop.permute.xlu0 %612
        %616 = vset.pattern.permute.xlu0 0
        %617 = vperm.xlu0 %616, %v423
        %v618 = vpop.permute.xlu0 %617
        %621 = vset.pattern.permute.xlu0 0
        %622 = vperm.xlu0 %621, %v424
        %v623 = vpop.permute.xlu0 %622
        %626 = vset.pattern.permute.xlu0 0
        %627 = vperm.xlu0 %626, %v425
        %v628 = vpop.permute.xlu0 %627
        %631 = vset.pattern.permute.xlu0 0
        %632 = vperm.xlu0 %631, %v426
        %v633 = vpop.permute.xlu0 %632
        %636 = vset.pattern.permute.xlu0 0
        %637 = vperm.xlu0 %636, %v427
        %v638 = vpop.permute.xlu0 %637
        %641 = vset.pattern.permute.xlu0 0
        %642 = vperm.xlu0 %641, %v428
        %v643 = vpop.permute.xlu0 %642
        %646 = vset.pattern.permute.xlu0 0
        %647 = vperm.xlu0 %646, %v429
        %v648 = vpop.permute.xlu0 %647
        %651 = vset.pattern.permute.xlu0 0
        %652 = vperm.xlu0 %651, %v430
        %v653 = vpop.permute.xlu0 %652
        %656 = vset.pattern.permute.xlu0 0
        %657 = vperm.xlu0 %656, %v431
        %v658 = vpop.permute.xlu0 %657
        %661 = vset.pattern.permute.xlu0 0
        %662 = vperm.xlu0 %661, %v432
        %v663 = vpop.permute.xlu0 %662
        %666 = vset.pattern.permute.xlu0 0
        %667 = vperm.xlu0 %666, %v433
        %v668 = vpop.permute.xlu0 %667
        %671 = vset.pattern.permute.xlu0 0
        %672 = vperm.xlu0 %671, %v434
        %v673 = vpop.permute.xlu0 %672
        %676 = vset.pattern.permute.xlu0 0
        %677 = vperm.xlu0 %676, %v435
        %v678 = vpop.permute.xlu0 %677
        %681 = vset.pattern.permute.xlu0 0
        %682 = vperm.xlu0 %681, %v436
        %v683 = vpop.permute.xlu0 %682
        %686 = vset.pattern.permute.xlu0 0
        %687 = vperm.xlu0 %686, %v437
        %v688 = vpop.permute.xlu0 %687
        %691 = vset.pattern.permute.xlu0 0
        %692 = vperm.xlu0 %691, %v438
        %v693 = vpop.permute.xlu0 %692
        %696 = vset.pattern.permute.xlu0 0
        %697 = vperm.xlu0 %696, %v439
        %v698 = vpop.permute.xlu0 %697
        %701 = vset.pattern.permute.xlu0 0
        %702 = vperm.xlu0 %701, %v440
        %v703 = vpop.permute.xlu0 %702
        %706 = vset.pattern.permute.xlu0 0
        %707 = vperm.xlu0 %706, %v441
        %v708 = vpop.permute.xlu0 %707
        %711 = vset.pattern.permute.xlu0 0
        %712 = vperm.xlu0 %711, %v442
        %v713 = vpop.permute.xlu0 %712
        %716 = vset.pattern.permute.xlu0 0
        %717 = vperm.xlu0 %716, %v443
        %v718 = vpop.permute.xlu0 %717
        %721 = vset.pattern.permute.xlu0 0
        %722 = vperm.xlu0 %721, %v444
        %v723 = vpop.permute.xlu0 %722
        %726 = vset.pattern.permute.xlu0 0
        %727 = vperm.xlu0 %726, %v445
        %v728 = vpop.permute.xlu0 %727
        %731 = vset.pattern.permute.xlu0 0
        %732 = vperm.xlu0 %731, %v446
        %v733 = vpop.permute.xlu0 %732
        %736 = vset.pattern.permute.xlu0 0
        %737 = vperm.xlu0 %736, %v447
        %v738 = vpop.permute.xlu0 %737
        %741 = vset.pattern.permute.xlu0 0
        %742 = vperm.xlu0 %741, %v448
        %v743 = vpop.permute.xlu0 %742
        %746 = vset.pattern.permute.xlu0 0
        %747 = vperm.xlu0 %746, %v449
        %v748 = vpop.permute.xlu0 %747
        %751 = vset.pattern.permute.xlu0 0
        %752 = vperm.xlu0 %751, %v450
        %v753 = vpop.permute.xlu0 %752
        %756 = vset.pattern.permute.xlu0 0
        %757 = vperm.xlu0 %756, %v451
        %v758 = vpop.permute.xlu0 %757
        %761 = vset.pattern.permute.xlu0 0
        %762 = vperm.xlu0 %761, %v452
        %v763 = vpop.permute.xlu0 %762
        %766 = vset.pattern.permute.xlu0 0
        %767 = vperm.xlu0 %766, %v453
        %v768 = vpop.permute.xlu0 %767
        %771 = vset.pattern.permute.xlu0 0
        %772 = vperm.xlu0 %771, %v454
        %v773 = vpop.permute.xlu0 %772
        %v839 = vunpack.c.l.b16 %v327
        %v840 = vunpack.c.l.b16 %v328
        %v841 = vunpack.c.l.b16 %v329
        %v842 = vunpack.c.l.b16 %v330
        %v843 = vunpack.c.l.b16 %v331
        %v844 = vunpack.c.l.b16 %v332
        %v845 = vunpack.c.l.b16 %v333
        %v846 = vunpack.c.l.b16 %v334
        %v847 = vunpack.c.l.b16 %v335
        %v848 = vunpack.c.l.b16 %v336
        %v849 = vunpack.c.l.b16 %v337
        %v850 = vunpack.c.l.b16 %v338
        %v851 = vunpack.c.l.b16 %v339
        %v852 = vunpack.c.l.b16 %v340
        %v853 = vunpack.c.l.b16 %v341
        %v854 = vunpack.c.l.b16 %v342
        %v855 = vunpack.c.l.b16 %v343
        %v856 = vunpack.c.l.b16 %v344
        %v857 = vunpack.c.l.b16 %v345
        %v858 = vunpack.c.l.b16 %v346
        %v859 = vunpack.c.l.b16 %v347
        %v860 = vunpack.c.l.b16 %v348
        %v861 = vunpack.c.l.b16 %v349
        %v862 = vunpack.c.l.b16 %v350
        %v863 = vunpack.c.l.b16 %v351
        %v864 = vunpack.c.l.b16 %v352
        %v865 = vunpack.c.l.b16 %v353
        %v866 = vunpack.c.l.b16 %v354
        %v867 = vunpack.c.l.b16 %v355
        %v868 = vunpack.c.l.b16 %v356
        %v869 = vunpack.c.l.b16 %v357
        %v870 = vunpack.c.l.b16 %v358
        %v871 = vunpack.c.l.b16 %v359
        %v872 = vunpack.c.l.b16 %v360
        %v873 = vunpack.c.l.b16 %v361
        %v874 = vunpack.c.l.b16 %v362
        %v875 = vunpack.c.l.b16 %v363
        %v876 = vunpack.c.l.b16 %v364
        %v877 = vunpack.c.l.b16 %v365
        %v878 = vunpack.c.l.b16 %v366
        %v879 = vunpack.c.l.b16 %v367
        %v880 = vunpack.c.l.b16 %v368
        %v881 = vunpack.c.l.b16 %v369
        %v882 = vunpack.c.l.b16 %v370
        %v883 = vunpack.c.l.b16 %v371
        %v884 = vunpack.c.l.b16 %v372
        %v885 = vunpack.c.l.b16 %v373
        %v886 = vunpack.c.l.b16 %v374
        %v887 = vunpack.c.l.b16 %v375
        %v888 = vunpack.c.l.b16 %v376
        %v889 = vunpack.c.l.b16 %v377
        %v890 = vunpack.c.l.b16 %v378
        %v891 = vunpack.c.l.b16 %v379
        %v892 = vunpack.c.l.b16 %v380
        %v893 = vunpack.c.l.b16 %v381
        %v894 = vunpack.c.l.b16 %v382
        %v895 = vunpack.c.l.b16 %v383
        %v896 = vunpack.c.l.b16 %v384
        %v897 = vunpack.c.l.b16 %v385
        %v898 = vunpack.c.l.b16 %v386
        %v899 = vunpack.c.l.b16 %v387
        %v900 = vunpack.c.l.b16 %v388
        %v901 = vunpack.c.l.b16 %v389
        %v902 = vunpack.c.l.b16 %v390
        %v903 = vpack.c.b16 %v840, %v839
        %v904 = vpack.c.b16 %v842, %v841
        %v905 = vpack.c.b16 %v844, %v843
        %v906 = vpack.c.b16 %v846, %v845
        %v907 = vpack.c.b16 %v848, %v847
        %v908 = vpack.c.b16 %v850, %v849
        %v909 = vpack.c.b16 %v852, %v851
        %v910 = vpack.c.b16 %v854, %v853
        %v911 = vpack.c.b16 %v856, %v855
        %v912 = vpack.c.b16 %v858, %v857
        %v913 = vpack.c.b16 %v860, %v859
        %v914 = vpack.c.b16 %v862, %v861
        %v915 = vpack.c.b16 %v864, %v863
        %v916 = vpack.c.b16 %v866, %v865
        %v917 = vpack.c.b16 %v868, %v867
        %v918 = vpack.c.b16 %v870, %v869
        %v919 = vpack.c.b16 %v872, %v871
        %v920 = vpack.c.b16 %v874, %v873
        %v921 = vpack.c.b16 %v876, %v875
        %v922 = vpack.c.b16 %v878, %v877
        %v923 = vpack.c.b16 %v880, %v879
        %v924 = vpack.c.b16 %v882, %v881
        %v925 = vpack.c.b16 %v884, %v883
        %v926 = vpack.c.b16 %v886, %v885
        %v927 = vpack.c.b16 %v888, %v887
        %v928 = vpack.c.b16 %v890, %v889
        %v929 = vpack.c.b16 %v892, %v891
        %v930 = vpack.c.b16 %v894, %v893
        %v931 = vpack.c.b16 %v896, %v895
        %v932 = vpack.c.b16 %v898, %v897
        %v933 = vpack.c.b16 %v900, %v899
        %v934 = vpack.c.b16 %v902, %v901
        %967 = vmatpush.bf16.xpose.msra.mxu0 %v326
        %968 = vmatpush.bf16.xpose.msra.mxu0 %v325
        %969 = vmatpush.bf16.xpose.msra.mxu0 %v324
        %970 = vmatpush.bf16.xpose.msra.mxu0 %v323
        %971 = vmatpush.bf16.xpose.msra.mxu0 %v322
        %972 = vmatpush.bf16.xpose.msra.mxu0 %v321
        %973 = vmatpush.bf16.xpose.msra.mxu0 %v320
        %974 = vmatpush.bf16.xpose.msra.mxu0 %v319
        %975 = vmatmul.bf16.gmra.mxu0 %v903
        %v976 = vpop.f32.mrf.mxu0
        %v977 = vadd.f32 %v458, %v976
        %v978 = vpop.f32.mrf.mxu0
        %v979 = vadd.f32 %v463, %v978
        %980 = vmatmul.bf16.gmra.mxu0 %v904
        %v981 = vpop.f32.mrf.mxu0
        %v982 = vadd.f32 %v468, %v981
        %v983 = vpop.f32.mrf.mxu0
        %v984 = vadd.f32 %v473, %v983
        %985 = vmatmul.bf16.gmra.mxu0 %v905
        %v986 = vpop.f32.mrf.mxu0
        %v987 = vadd.f32 %v478, %v986
        %v988 = vpop.f32.mrf.mxu0
        %v989 = vadd.f32 %v483, %v988
        %990 = vmatmul.bf16.gmra.mxu0 %v906
        %v991 = vpop.f32.mrf.mxu0
        %v992 = vadd.f32 %v488, %v991
        %v993 = vpop.f32.mrf.mxu0
        %v994 = vadd.f32 %v493, %v993
        %995 = vmatmul.bf16.gmra.mxu0 %v907
        %v996 = vpop.f32.mrf.mxu0
        %v997 = vadd.f32 %v498, %v996
        %v998 = vpop.f32.mrf.mxu0
        %v999 = vadd.f32 %v503, %v998
        %1000 = vmatmul.bf16.gmra.mxu0 %v908
        %v1001 = vpop.f32.mrf.mxu0
        %v1002 = vadd.f32 %v508, %v1001
        %v1003 = vpop.f32.mrf.mxu0
        %v1004 = vadd.f32 %v513, %v1003
        %1005 = vmatmul.bf16.gmra.mxu0 %v909
        %v1006 = vpop.f32.mrf.mxu0
        %v1007 = vadd.f32 %v518, %v1006
        %v1008 = vpop.f32.mrf.mxu0
        %v1009 = vadd.f32 %v523, %v1008
        %1010 = vmatmul.bf16.gmra.mxu0 %v910
        %v1011 = vpop.f32.mrf.mxu0
        %v1012 = vadd.f32 %v528, %v1011
        %v1013 = vpop.f32.mrf.mxu0
        %v1014 = vadd.f32 %v533, %v1013
        %1015 = vmatmul.bf16.gmra.mxu0 %v911
        %v1016 = vpop.f32.mrf.mxu0
        %v1017 = vadd.f32 %v538, %v1016
        %v1018 = vpop.f32.mrf.mxu0
        %v1019 = vadd.f32 %v543, %v1018
        %1020 = vmatmul.bf16.gmra.mxu0 %v912
        %v1021 = vpop.f32.mrf.mxu0
        %v1022 = vadd.f32 %v548, %v1021
        %v1023 = vpop.f32.mrf.mxu0
        %v1024 = vadd.f32 %v553, %v1023
        %1025 = vmatmul.bf16.gmra.mxu0 %v913
        %v1026 = vpop.f32.mrf.mxu0
        %v1027 = vadd.f32 %v558, %v1026
        %v1028 = vpop.f32.mrf.mxu0
        %v1029 = vadd.f32 %v563, %v1028
        %1030 = vmatmul.bf16.gmra.mxu0 %v914
        %v1031 = vpop.f32.mrf.mxu0
        %v1032 = vadd.f32 %v568, %v1031
        %v1033 = vpop.f32.mrf.mxu0
        %v1034 = vadd.f32 %v573, %v1033
        %1035 = vmatmul.bf16.gmra.mxu0 %v915
        %v1036 = vpop.f32.mrf.mxu0
        %v1037 = vadd.f32 %v578, %v1036
        %v1038 = vpop.f32.mrf.mxu0
        %v1039 = vadd.f32 %v583, %v1038
        %1040 = vmatmul.bf16.gmra.mxu0 %v916
        %v1041 = vpop.f32.mrf.mxu0
        %v1042 = vadd.f32 %v588, %v1041
        %v1043 = vpop.f32.mrf.mxu0
        %v1044 = vadd.f32 %v593, %v1043
        %1045 = vmatmul.bf16.gmra.mxu0 %v917
        %v1046 = vpop.f32.mrf.mxu0
        %v1047 = vadd.f32 %v598, %v1046
        %v1048 = vpop.f32.mrf.mxu0
        %v1049 = vadd.f32 %v603, %v1048
        %1050 = vmatmul.bf16.gmra.mxu0 %v918
        %v1051 = vpop.f32.mrf.mxu0
        %v1052 = vadd.f32 %v608, %v1051
        %v1053 = vpop.f32.mrf.mxu0
        %v1054 = vadd.f32 %v613, %v1053
        %1055 = vmatmul.bf16.gmra.mxu0 %v919
        %v1056 = vpop.f32.mrf.mxu0
        %v1057 = vadd.f32 %v618, %v1056
        %v1058 = vpop.f32.mrf.mxu0
        %v1059 = vadd.f32 %v623, %v1058
        %1060 = vmatmul.bf16.gmra.mxu0 %v920
        %v1061 = vpop.f32.mrf.mxu0
        %v1062 = vadd.f32 %v628, %v1061
        %v1063 = vpop.f32.mrf.mxu0
        %v1064 = vadd.f32 %v633, %v1063
        %1065 = vmatmul.bf16.gmra.mxu0 %v921
        %v1066 = vpop.f32.mrf.mxu0
        %v1067 = vadd.f32 %v638, %v1066
        %v1068 = vpop.f32.mrf.mxu0
        %v1069 = vadd.f32 %v643, %v1068
        %1070 = vmatmul.bf16.gmra.mxu0 %v922
        %v1071 = vpop.f32.mrf.mxu0
        %v1072 = vadd.f32 %v648, %v1071
        %v1073 = vpop.f32.mrf.mxu0
        %v1074 = vadd.f32 %v653, %v1073
        %1075 = vmatmul.bf16.gmra.mxu0 %v923
        %v1076 = vpop.f32.mrf.mxu0
        %v1077 = vadd.f32 %v658, %v1076
        %v1078 = vpop.f32.mrf.mxu0
        %v1079 = vadd.f32 %v663, %v1078
        %1080 = vmatmul.bf16.gmra.mxu0 %v924
        %v1081 = vpop.f32.mrf.mxu0
        %v1082 = vadd.f32 %v668, %v1081
        %v1083 = vpop.f32.mrf.mxu0
        %v1084 = vadd.f32 %v673, %v1083
        %1085 = vmatmul.bf16.gmra.mxu0 %v925
        %v1086 = vpop.f32.mrf.mxu0
        %v1087 = vadd.f32 %v678, %v1086
        %v1088 = vpop.f32.mrf.mxu0
        %v1089 = vadd.f32 %v683, %v1088
        %1090 = vmatmul.bf16.gmra.mxu0 %v926
        %v1091 = vpop.f32.mrf.mxu0
        %v1092 = vadd.f32 %v688, %v1091
        %v1093 = vpop.f32.mrf.mxu0
        %v1094 = vadd.f32 %v693, %v1093
        %1095 = vmatmul.bf16.gmra.mxu0 %v927
        %v1096 = vpop.f32.mrf.mxu0
        %v1097 = vadd.f32 %v698, %v1096
        %v1098 = vpop.f32.mrf.mxu0
        %v1099 = vadd.f32 %v703, %v1098
        %1100 = vmatmul.bf16.gmra.mxu0 %v928
        %v1101 = vpop.f32.mrf.mxu0
        %v1102 = vadd.f32 %v708, %v1101
        %v1103 = vpop.f32.mrf.mxu0
        %v1104 = vadd.f32 %v713, %v1103
        %1105 = vmatmul.bf16.gmra.mxu0 %v929
        %v1106 = vpop.f32.mrf.mxu0
        %v1107 = vadd.f32 %v718, %v1106
        %v1108 = vpop.f32.mrf.mxu0
        %v1109 = vadd.f32 %v723, %v1108
        %1110 = vmatmul.bf16.gmra.mxu0 %v930
        %v1111 = vpop.f32.mrf.mxu0
        %v1112 = vadd.f32 %v728, %v1111
        %v1113 = vpop.f32.mrf.mxu0
        %v1114 = vadd.f32 %v733, %v1113
        %1115 = vmatmul.bf16.gmra.mxu0 %v931
        %v1116 = vpop.f32.mrf.mxu0
        %v1117 = vadd.f32 %v738, %v1116
        %v1118 = vpop.f32.mrf.mxu0
        %v1119 = vadd.f32 %v743, %v1118
        %1120 = vmatmul.bf16.gmra.mxu0 %v932
        %v1121 = vpop.f32.mrf.mxu0
        %v1122 = vadd.f32 %v748, %v1121
        %v1123 = vpop.f32.mrf.mxu0
        %v1124 = vadd.f32 %v753, %v1123
        %1125 = vmatmul.bf16.gmra.mxu0 %v933
        %v1126 = vpop.f32.mrf.mxu0
        %v1127 = vadd.f32 %v758, %v1126
        %v1128 = vpop.f32.mrf.mxu0
        %v1129 = vadd.f32 %v763, %v1128
        %1130 = vmatmul.bf16.gmra.mxu0 %v934
        %v1131 = vpop.f32.mrf.mxu0
        %v1132 = vadd.f32 %v768, %v1131
        %v1133 = vpop.f32.mrf.mxu0
        %v1134 = vadd.f32 %v773, %v1133
        %1135 = vdwg.mxu0
        %v1136 = vmul.f32 %v977, %v977
        %v1137 = vmul.f32 %v979, %v979
        %v1138 = vmul.f32 %v982, %v982
        %v1139 = vmul.f32 %v984, %v984
        %v1140 = vmul.f32 %v987, %v987
        %v1141 = vmul.f32 %v989, %v989
        %v1142 = vmul.f32 %v992, %v992
        %v1143 = vmul.f32 %v994, %v994
        %v1144 = vmul.f32 %v997, %v997
        %v1145 = vmul.f32 %v999, %v999
        %v1146 = vmul.f32 %v1002, %v1002
        %v1147 = vmul.f32 %v1004, %v1004
        %v1148 = vmul.f32 %v1007, %v1007
        %v1149 = vmul.f32 %v1009, %v1009
        %v1150 = vmul.f32 %v1012, %v1012
        %v1151 = vmul.f32 %v1014, %v1014
        %v1152 = vmul.f32 %v1017, %v1017
        %v1153 = vmul.f32 %v1019, %v1019
        %v1154 = vmul.f32 %v1022, %v1022
        %v1155 = vmul.f32 %v1024, %v1024
        %v1156 = vmul.f32 %v1027, %v1027
        %v1157 = vmul.f32 %v1029, %v1029
        %v1158 = vmul.f32 %v1032, %v1032
        %v1159 = vmul.f32 %v1034, %v1034
        %v1160 = vmul.f32 %v1037, %v1037
        %v1161 = vmul.f32 %v1039, %v1039
        %v1162 = vmul.f32 %v1042, %v1042
        %v1163 = vmul.f32 %v1044, %v1044
        %v1164 = vmul.f32 %v1047, %v1047
        %v1165 = vmul.f32 %v1049, %v1049
        %v1166 = vmul.f32 %v1052, %v1052
        %v1167 = vmul.f32 %v1054, %v1054
        %v1168 = vmul.f32 %v1057, %v1057
        %v1169 = vmul.f32 %v1059, %v1059
        %v1170 = vmul.f32 %v1062, %v1062
        %v1171 = vmul.f32 %v1064, %v1064
        %v1172 = vmul.f32 %v1067, %v1067
        %v1173 = vmul.f32 %v1069, %v1069
        %v1174 = vmul.f32 %v1072, %v1072
        %v1175 = vmul.f32 %v1074, %v1074
        %v1176 = vmul.f32 %v1077, %v1077
        %v1177 = vmul.f32 %v1079, %v1079
        %v1178 = vmul.f32 %v1082, %v1082
        %v1179 = vmul.f32 %v1084, %v1084
        %v1180 = vmul.f32 %v1087, %v1087
        %v1181 = vmul.f32 %v1089, %v1089
        %v1182 = vmul.f32 %v1092, %v1092
        %v1183 = vmul.f32 %v1094, %v1094
        %v1184 = vmul.f32 %v1097, %v1097
        %v1185 = vmul.f32 %v1099, %v1099
        %v1186 = vmul.f32 %v1102, %v1102
        %v1187 = vmul.f32 %v1104, %v1104
        %v1188 = vmul.f32 %v1107, %v1107
        %v1189 = vmul.f32 %v1109, %v1109
        %v1190 = vmul.f32 %v1112, %v1112
        %v1191 = vmul.f32 %v1114, %v1114
        %v1192 = vmul.f32 %v1117, %v1117
        %v1193 = vmul.f32 %v1119, %v1119
        %v1194 = vmul.f32 %v1122, %v1122
        %v1195 = vmul.f32 %v1124, %v1124
        %v1196 = vmul.f32 %v1127, %v1127
        %v1197 = vmul.f32 %v1129, %v1129
        %v1198 = vmul.f32 %v1132, %v1132
        %v1199 = vmul.f32 %v1134, %v1134
        %v1200 = vmul.f32 %v977, %v1136
        %v1201 = vmul.f32 %v979, %v1137
        %v1202 = vmul.f32 %v982, %v1138
        %v1203 = vmul.f32 %v984, %v1139
        %v1204 = vmul.f32 %v987, %v1140
        %v1205 = vmul.f32 %v989, %v1141
        %v1206 = vmul.f32 %v992, %v1142
        %v1207 = vmul.f32 %v994, %v1143
        %v1208 = vmul.f32 %v997, %v1144
        %v1209 = vmul.f32 %v999, %v1145
        %v1210 = vmul.f32 %v1002, %v1146
        %v1211 = vmul.f32 %v1004, %v1147
        %v1212 = vmul.f32 %v1007, %v1148
        %v1213 = vmul.f32 %v1009, %v1149
        %v1214 = vmul.f32 %v1012, %v1150
        %v1215 = vmul.f32 %v1014, %v1151
        %v1216 = vmul.f32 %v1017, %v1152
        %v1217 = vmul.f32 %v1019, %v1153
        %v1218 = vmul.f32 %v1022, %v1154
        %v1219 = vmul.f32 %v1024, %v1155
        %v1220 = vmul.f32 %v1027, %v1156
        %v1221 = vmul.f32 %v1029, %v1157
        %v1222 = vmul.f32 %v1032, %v1158
        %v1223 = vmul.f32 %v1034, %v1159
        %v1224 = vmul.f32 %v1037, %v1160
        %v1225 = vmul.f32 %v1039, %v1161
        %v1226 = vmul.f32 %v1042, %v1162
        %v1227 = vmul.f32 %v1044, %v1163
        %v1228 = vmul.f32 %v1047, %v1164
        %v1229 = vmul.f32 %v1049, %v1165
        %v1230 = vmul.f32 %v1052, %v1166
        %v1231 = vmul.f32 %v1054, %v1167
        %v1232 = vmul.f32 %v1057, %v1168
        %v1233 = vmul.f32 %v1059, %v1169
        %v1234 = vmul.f32 %v1062, %v1170
        %v1235 = vmul.f32 %v1064, %v1171
        %v1236 = vmul.f32 %v1067, %v1172
        %v1237 = vmul.f32 %v1069, %v1173
        %v1238 = vmul.f32 %v1072, %v1174
        %v1239 = vmul.f32 %v1074, %v1175
        %v1240 = vmul.f32 %v1077, %v1176
        %v1241 = vmul.f32 %v1079, %v1177
        %v1242 = vmul.f32 %v1082, %v1178
        %v1243 = vmul.f32 %v1084, %v1179
        %v1244 = vmul.f32 %v1087, %v1180
        %v1245 = vmul.f32 %v1089, %v1181
        %v1246 = vmul.f32 %v1092, %v1182
        %v1247 = vmul.f32 %v1094, %v1183
        %v1248 = vmul.f32 %v1097, %v1184
        %v1249 = vmul.f32 %v1099, %v1185
        %v1250 = vmul.f32 %v1102, %v1186
        %v1251 = vmul.f32 %v1104, %v1187
        %v1252 = vmul.f32 %v1107, %v1188
        %v1253 = vmul.f32 %v1109, %v1189
        %v1254 = vmul.f32 %v1112, %v1190
        %v1255 = vmul.f32 %v1114, %v1191
        %v1256 = vmul.f32 %v1117, %v1192
        %v1257 = vmul.f32 %v1119, %v1193
        %v1258 = vmul.f32 %v1122, %v1194
        %v1259 = vmul.f32 %v1124, %v1195
        %v1260 = vmul.f32 %v1127, %v1196
        %v1261 = vmul.f32 %v1129, %v1197
        %v1262 = vmul.f32 %v1132, %v1198
        %v1263 = vmul.f32 %v1134, %v1199
        %v1264 = vmul.f32 %v1200, 0.044715
        %v1265 = vmul.f32 %v1201, 0.044715
        %v1266 = vmul.f32 %v1202, 0.044715
        %v1267 = vmul.f32 %v1203, 0.044715
        %v1268 = vmul.f32 %v1204, 0.044715
        %v1269 = vmul.f32 %v1205, 0.044715
        %v1270 = vmul.f32 %v1206, 0.044715
        %v1271 = vmul.f32 %v1207, 0.044715
        %v1272 = vmul.f32 %v1208, 0.044715
        %v1273 = vmul.f32 %v1209, 0.044715
        %v1274 = vmul.f32 %v1210, 0.044715
        %v1275 = vmul.f32 %v1211, 0.044715
        %v1276 = vmul.f32 %v1212, 0.044715
        %v1277 = vmul.f32 %v1213, 0.044715
        %v1278 = vmul.f32 %v1214, 0.044715
        %v1279 = vmul.f32 %v1215, 0.044715
        %v1280 = vmul.f32 %v1216, 0.044715
        %v1281 = vmul.f32 %v1217, 0.044715
        %v1282 = vmul.f32 %v1218, 0.044715
        %v1283 = vmul.f32 %v1219, 0.044715
        %v1284 = vmul.f32 %v1220, 0.044715
        %v1285 = vmul.f32 %v1221, 0.044715
        %v1286 = vmul.f32 %v1222, 0.044715
        %v1287 = vmul.f32 %v1223, 0.044715
        %v1288 = vmul.f32 %v1224, 0.044715
        %v1289 = vmul.f32 %v1225, 0.044715
        %v1290 = vmul.f32 %v1226, 0.044715
        %v1291 = vmul.f32 %v1227, 0.044715
        %v1292 = vmul.f32 %v1228, 0.044715
        %v1293 = vmul.f32 %v1229, 0.044715
        %v1294 = vmul.f32 %v1230, 0.044715
        %v1295 = vmul.f32 %v1231, 0.044715
        %v1296 = vmul.f32 %v1232, 0.044715
        %v1297 = vmul.f32 %v1233, 0.044715
        %v1298 = vmul.f32 %v1234, 0.044715
        %v1299 = vmul.f32 %v1235, 0.044715
        %v1300 = vmul.f32 %v1236, 0.044715
        %v1301 = vmul.f32 %v1237, 0.044715
        %v1302 = vmul.f32 %v1238, 0.044715
        %v1303 = vmul.f32 %v1239, 0.044715
        %v1304 = vmul.f32 %v1240, 0.044715
        %v1305 = vmul.f32 %v1241, 0.044715
        %v1306 = vmul.f32 %v1242, 0.044715
        %v1307 = vmul.f32 %v1243, 0.044715
        %v1308 = vmul.f32 %v1244, 0.044715
        %v1309 = vmul.f32 %v1245, 0.044715
        %v1310 = vmul.f32 %v1246, 0.044715
        %v1311 = vmul.f32 %v1247, 0.044715
        %v1312 = vmul.f32 %v1248, 0.044715
        %v1313 = vmul.f32 %v1249, 0.044715
        %v1314 = vmul.f32 %v1250, 0.044715
        %v1315 = vmul.f32 %v1251, 0.044715
        %v1316 = vmul.f32 %v1252, 0.044715
        %v1317 = vmul.f32 %v1253, 0.044715
        %v1318 = vmul.f32 %v1254, 0.044715
        %v1319 = vmul.f32 %v1255, 0.044715
        %v1320 = vmul.f32 %v1256, 0.044715
        %v1321 = vmul.f32 %v1257, 0.044715
        %v1322 = vmul.f32 %v1258, 0.044715
        %v1323 = vmul.f32 %v1259, 0.044715
        %v1324 = vmul.f32 %v1260, 0.044715
        %v1325 = vmul.f32 %v1261, 0.044715
        %v1326 = vmul.f32 %v1262, 0.044715
        %v1327 = vmul.f32 %v1263, 0.044715
        %v1328 = vadd.f32 %v977, %v1264
        %v1329 = vadd.f32 %v979, %v1265
        %v1330 = vadd.f32 %v982, %v1266
        %v1331 = vadd.f32 %v984, %v1267
        %v1332 = vadd.f32 %v987, %v1268
        %v1333 = vadd.f32 %v989, %v1269
        %v1334 = vadd.f32 %v992, %v1270
        %v1335 = vadd.f32 %v994, %v1271
        %v1336 = vadd.f32 %v997, %v1272
        %v1337 = vadd.f32 %v999, %v1273
        %v1338 = vadd.f32 %v1002, %v1274
        %v1339 = vadd.f32 %v1004, %v1275
        %v1340 = vadd.f32 %v1007, %v1276
        %v1341 = vadd.f32 %v1009, %v1277
        %v1342 = vadd.f32 %v1012, %v1278
        %v1343 = vadd.f32 %v1014, %v1279
        %v1344 = vadd.f32 %v1017, %v1280
        %v1345 = vadd.f32 %v1019, %v1281
        %v1346 = vadd.f32 %v1022, %v1282
        %v1347 = vadd.f32 %v1024, %v1283
        %v1348 = vadd.f32 %v1027, %v1284
        %v1349 = vadd.f32 %v1029, %v1285
        %v1350 = vadd.f32 %v1032, %v1286
        %v1351 = vadd.f32 %v1034, %v1287
        %v1352 = vadd.f32 %v1037, %v1288
        %v1353 = vadd.f32 %v1039, %v1289
        %v1354 = vadd.f32 %v1042, %v1290
        %v1355 = vadd.f32 %v1044, %v1291
        %v1356 = vadd.f32 %v1047, %v1292
        %v1357 = vadd.f32 %v1049, %v1293
        %v1358 = vadd.f32 %v1052, %v1294
        %v1359 = vadd.f32 %v1054, %v1295
        %v1360 = vadd.f32 %v1057, %v1296
        %v1361 = vadd.f32 %v1059, %v1297
        %v1362 = vadd.f32 %v1062, %v1298
        %v1363 = vadd.f32 %v1064, %v1299
        %v1364 = vadd.f32 %v1067, %v1300
        %v1365 = vadd.f32 %v1069, %v1301
        %v1366 = vadd.f32 %v1072, %v1302
        %v1367 = vadd.f32 %v1074, %v1303
        %v1368 = vadd.f32 %v1077, %v1304
        %v1369 = vadd.f32 %v1079, %v1305
        %v1370 = vadd.f32 %v1082, %v1306
        %v1371 = vadd.f32 %v1084, %v1307
        %v1372 = vadd.f32 %v1087, %v1308
        %v1373 = vadd.f32 %v1089, %v1309
        %v1374 = vadd.f32 %v1092, %v1310
        %v1375 = vadd.f32 %v1094, %v1311
        %v1376 = vadd.f32 %v1097, %v1312
        %v1377 = vadd.f32 %v1099, %v1313
        %v1378 = vadd.f32 %v1102, %v1314
        %v1379 = vadd.f32 %v1104, %v1315
        %v1380 = vadd.f32 %v1107, %v1316
        %v1381 = vadd.f32 %v1109, %v1317
        %v1382 = vadd.f32 %v1112, %v1318
        %v1383 = vadd.f32 %v1114, %v1319
        %v1384 = vadd.f32 %v1117, %v1320
        %v1385 = vadd.f32 %v1119, %v1321
        %v1386 = vadd.f32 %v1122, %v1322
        %v1387 = vadd.f32 %v1124, %v1323
        %v1388 = vadd.f32 %v1127, %v1324
        %v1389 = vadd.f32 %v1129, %v1325
        %v1390 = vadd.f32 %v1132, %v1326
        %v1391 = vadd.f32 %v1134, %v1327
        %v1392 = vmul.f32 %v1328, 0.7978846
        %v1393 = vmul.f32 %v1329, 0.7978846
        %v1394 = vmul.f32 %v1330, 0.7978846
        %v1395 = vmul.f32 %v1331, 0.7978846
        %v1396 = vmul.f32 %v1332, 0.7978846
        %v1397 = vmul.f32 %v1333, 0.7978846
        %v1398 = vmul.f32 %v1334, 0.7978846
        %v1399 = vmul.f32 %v1335, 0.7978846
        %v1400 = vmul.f32 %v1336, 0.7978846
        %v1401 = vmul.f32 %v1337, 0.7978846
        %v1402 = vmul.f32 %v1338, 0.7978846
        %v1403 = vmul.f32 %v1339, 0.7978846
        %v1404 = vmul.f32 %v1340, 0.7978846
        %v1405 = vmul.f32 %v1341, 0.7978846
        %v1406 = vmul.f32 %v1342, 0.7978846
        %v1407 = vmul.f32 %v1343, 0.7978846
        %v1408 = vmul.f32 %v1344, 0.7978846
        %v1409 = vmul.f32 %v1345, 0.7978846
        %v1410 = vmul.f32 %v1346, 0.7978846
        %v1411 = vmul.f32 %v1347, 0.7978846
        %v1412 = vmul.f32 %v1348, 0.7978846
        %v1413 = vmul.f32 %v1349, 0.7978846
        %v1414 = vmul.f32 %v1350, 0.7978846
        %v1415 = vmul.f32 %v1351, 0.7978846
        %v1416 = vmul.f32 %v1352, 0.7978846
        %v1417 = vmul.f32 %v1353, 0.7978846
        %v1418 = vmul.f32 %v1354, 0.7978846
        %v1419 = vmul.f32 %v1355, 0.7978846
        %v1420 = vmul.f32 %v1356, 0.7978846
        %v1421 = vmul.f32 %v1357, 0.7978846
        %v1422 = vmul.f32 %v1358, 0.7978846
        %v1423 = vmul.f32 %v1359, 0.7978846
        %v1424 = vmul.f32 %v1360, 0.7978846
        %v1425 = vmul.f32 %v1361, 0.7978846
        %v1426 = vmul.f32 %v1362, 0.7978846
        %v1427 = vmul.f32 %v1363, 0.7978846
        %v1428 = vmul.f32 %v1364, 0.7978846
        %v1429 = vmul.f32 %v1365, 0.7978846
        %v1430 = vmul.f32 %v1366, 0.7978846
        %v1431 = vmul.f32 %v1367, 0.7978846
        %v1432 = vmul.f32 %v1368, 0.7978846
        %v1433 = vmul.f32 %v1369, 0.7978846
        %v1434 = vmul.f32 %v1370, 0.7978846
        %v1435 = vmul.f32 %v1371, 0.7978846
        %v1436 = vmul.f32 %v1372, 0.7978846
        %v1437 = vmul.f32 %v1373, 0.7978846
        %v1438 = vmul.f32 %v1374, 0.7978846
        %v1439 = vmul.f32 %v1375, 0.7978846
        %v1440 = vmul.f32 %v1376, 0.7978846
        %v1441 = vmul.f32 %v1377, 0.7978846
        %v1442 = vmul.f32 %v1378, 0.7978846
        %v1443 = vmul.f32 %v1379, 0.7978846
        %v1444 = vmul.f32 %v1380, 0.7978846
        %v1445 = vmul.f32 %v1381, 0.7978846
        %v1446 = vmul.f32 %v1382, 0.7978846
        %v1447 = vmul.f32 %v1383, 0.7978846
        %v1448 = vmul.f32 %v1384, 0.7978846
        %v1449 = vmul.f32 %v1385, 0.7978846
        %v1450 = vmul.f32 %v1386, 0.7978846
        %v1451 = vmul.f32 %v1387, 0.7978846
        %v1452 = vmul.f32 %v1388, 0.7978846
        %v1453 = vmul.f32 %v1389, 0.7978846
        %v1454 = vmul.f32 %v1390, 0.7978846
        %v1455 = vmul.f32 %v1391, 0.7978846
        %v1456 = vtanh.pop %v1392
        %v1457 = vtanh.pop %v1393
        %v1458 = vtanh.pop %v1394
        %v1459 = vtanh.pop %v1395
        %v1460 = vtanh.pop %v1396
        %v1461 = vtanh.pop %v1397
        %v1462 = vtanh.pop %v1398
        %v1463 = vtanh.pop %v1399
        %v1464 = vtanh.pop %v1400
        %v1465 = vtanh.pop %v1401
        %v1466 = vtanh.pop %v1402
        %v1467 = vtanh.pop %v1403
        %v1468 = vtanh.pop %v1404
        %v1469 = vtanh.pop %v1405
        %v1470 = vtanh.pop %v1406
        %v1471 = vtanh.pop %v1407
        %v1472 = vtanh.pop %v1408
        %v1473 = vtanh.pop %v1409
        %v1474 = vtanh.pop %v1410
        %v1475 = vtanh.pop %v1411
        %v1476 = vtanh.pop %v1412
        %v1477 = vtanh.pop %v1413
        %v1478 = vtanh.pop %v1414
        %v1479 = vtanh.pop %v1415
        %v1480 = vtanh.pop %v1416
        %v1481 = vtanh.pop %v1417
        %v1482 = vtanh.pop %v1418
        %v1483 = vtanh.pop %v1419
        %v1484 = vtanh.pop %v1420
        %v1485 = vtanh.pop %v1421
        %v1486 = vtanh.pop %v1422
        %v1487 = vtanh.pop %v1423
        %v1488 = vtanh.pop %v1424
        %v1489 = vtanh.pop %v1425
        %v1490 = vtanh.pop %v1426
        %v1491 = vtanh.pop %v1427
        %v1492 = vtanh.pop %v1428
        %v1493 = vtanh.pop %v1429
        %v1494 = vtanh.pop %v1430
        %v1495 = vtanh.pop %v1431
        %v1496 = vtanh.pop %v1432
        %v1497 = vtanh.pop %v1433
        %v1498 = vtanh.pop %v1434
        %v1499 = vtanh.pop %v1435
        %v1500 = vtanh.pop %v1436
        %v1501 = vtanh.pop %v1437
        %v1502 = vtanh.pop %v1438
        %v1503 = vtanh.pop %v1439
        %v1504 = vtanh.pop %v1440
        %v1505 = vtanh.pop %v1441
        %v1506 = vtanh.pop %v1442
        %v1507 = vtanh.pop %v1443
        %v1508 = vtanh.pop %v1444
        %v1509 = vtanh.pop %v1445
        %v1510 = vtanh.pop %v1446
        %v1511 = vtanh.pop %v1447
        %v1512 = vtanh.pop %v1448
        %v1513 = vtanh.pop %v1449
        %v1514 = vtanh.pop %v1450
        %v1515 = vtanh.pop %v1451
        %v1516 = vtanh.pop %v1452
        %v1517 = vtanh.pop %v1453
        %v1518 = vtanh.pop %v1454
        %v1519 = vtanh.pop %v1455
        %v1520 = vadd.f32 %v1456, 1.0
        %v1521 = vadd.f32 %v1457, 1.0
        %v1522 = vadd.f32 %v1458, 1.0
        %v1523 = vadd.f32 %v1459, 1.0
        %v1524 = vadd.f32 %v1460, 1.0
        %v1525 = vadd.f32 %v1461, 1.0
        %v1526 = vadd.f32 %v1462, 1.0
        %v1527 = vadd.f32 %v1463, 1.0
        %v1528 = vadd.f32 %v1464, 1.0
        %v1529 = vadd.f32 %v1465, 1.0
        %v1530 = vadd.f32 %v1466, 1.0
        %v1531 = vadd.f32 %v1467, 1.0
        %v1532 = vadd.f32 %v1468, 1.0
        %v1533 = vadd.f32 %v1469, 1.0
        %v1534 = vadd.f32 %v1470, 1.0
        %v1535 = vadd.f32 %v1471, 1.0
        %v1536 = vadd.f32 %v1472, 1.0
        %v1537 = vadd.f32 %v1473, 1.0
        %v1538 = vadd.f32 %v1474, 1.0
        %v1539 = vadd.f32 %v1475, 1.0
        %v1540 = vadd.f32 %v1476, 1.0
        %v1541 = vadd.f32 %v1477, 1.0
        %v1542 = vadd.f32 %v1478, 1.0
        %v1543 = vadd.f32 %v1479, 1.0
        %v1544 = vadd.f32 %v1480, 1.0
        %v1545 = vadd.f32 %v1481, 1.0
        %v1546 = vadd.f32 %v1482, 1.0
        %v1547 = vadd.f32 %v1483, 1.0
        %v1548 = vadd.f32 %v1484, 1.0
        %v1549 = vadd.f32 %v1485, 1.0
        %v1550 = vadd.f32 %v1486, 1.0
        %v1551 = vadd.f32 %v1487, 1.0
        %v1552 = vadd.f32 %v1488, 1.0
        %v1553 = vadd.f32 %v1489, 1.0
        %v1554 = vadd.f32 %v1490, 1.0
        %v1555 = vadd.f32 %v1491, 1.0
        %v1556 = vadd.f32 %v1492, 1.0
        %v1557 = vadd.f32 %v1493, 1.0
        %v1558 = vadd.f32 %v1494, 1.0
        %v1559 = vadd.f32 %v1495, 1.0
        %v1560 = vadd.f32 %v1496, 1.0
        %v1561 = vadd.f32 %v1497, 1.0
        %v1562 = vadd.f32 %v1498, 1.0
        %v1563 = vadd.f32 %v1499, 1.0
        %v1564 = vadd.f32 %v1500, 1.0
        %v1565 = vadd.f32 %v1501, 1.0
        %v1566 = vadd.f32 %v1502, 1.0
        %v1567 = vadd.f32 %v1503, 1.0
        %v1568 = vadd.f32 %v1504, 1.0
        %v1569 = vadd.f32 %v1505, 1.0
        %v1570 = vadd.f32 %v1506, 1.0
        %v1571 = vadd.f32 %v1507, 1.0
        %v1572 = vadd.f32 %v1508, 1.0
        %v1573 = vadd.f32 %v1509, 1.0
        %v1574 = vadd.f32 %v1510, 1.0
        %v1575 = vadd.f32 %v1511, 1.0
        %v1576 = vadd.f32 %v1512, 1.0
        %v1577 = vadd.f32 %v1513, 1.0
        %v1578 = vadd.f32 %v1514, 1.0
        %v1579 = vadd.f32 %v1515, 1.0
        %v1580 = vadd.f32 %v1516, 1.0
        %v1581 = vadd.f32 %v1517, 1.0
        %v1582 = vadd.f32 %v1518, 1.0
        %v1583 = vadd.f32 %v1519, 1.0
        %v1584 = vmul.f32 %v1520, 0.5
        %v1585 = vmul.f32 %v1521, 0.5
        %v1586 = vmul.f32 %v1522, 0.5
        %v1587 = vmul.f32 %v1523, 0.5
        %v1588 = vmul.f32 %v1524, 0.5
        %v1589 = vmul.f32 %v1525, 0.5
        %v1590 = vmul.f32 %v1526, 0.5
        %v1591 = vmul.f32 %v1527, 0.5
        %v1592 = vmul.f32 %v1528, 0.5
        %v1593 = vmul.f32 %v1529, 0.5
        %v1594 = vmul.f32 %v1530, 0.5
        %v1595 = vmul.f32 %v1531, 0.5
        %v1596 = vmul.f32 %v1532, 0.5
        %v1597 = vmul.f32 %v1533, 0.5
        %v1598 = vmul.f32 %v1534, 0.5
        %v1599 = vmul.f32 %v1535, 0.5
        %v1600 = vmul.f32 %v1536, 0.5
        %v1601 = vmul.f32 %v1537, 0.5
        %v1602 = vmul.f32 %v1538, 0.5
        %v1603 = vmul.f32 %v1539, 0.5
        %v1604 = vmul.f32 %v1540, 0.5
        %v1605 = vmul.f32 %v1541, 0.5
        %v1606 = vmul.f32 %v1542, 0.5
        %v1607 = vmul.f32 %v1543, 0.5
        %v1608 = vmul.f32 %v1544, 0.5
        %v1609 = vmul.f32 %v1545, 0.5
        %v1610 = vmul.f32 %v1546, 0.5
        %v1611 = vmul.f32 %v1547, 0.5
        %v1612 = vmul.f32 %v1548, 0.5
        %v1613 = vmul.f32 %v1549, 0.5
        %v1614 = vmul.f32 %v1550, 0.5
        %v1615 = vmul.f32 %v1551, 0.5
        %v1616 = vmul.f32 %v1552, 0.5
        %v1617 = vmul.f32 %v1553, 0.5
        %v1618 = vmul.f32 %v1554, 0.5
        %v1619 = vmul.f32 %v1555, 0.5
        %v1620 = vmul.f32 %v1556, 0.5
        %v1621 = vmul.f32 %v1557, 0.5
        %v1622 = vmul.f32 %v1558, 0.5
        %v1623 = vmul.f32 %v1559, 0.5
        %v1624 = vmul.f32 %v1560, 0.5
        %v1625 = vmul.f32 %v1561, 0.5
        %v1626 = vmul.f32 %v1562, 0.5
        %v1627 = vmul.f32 %v1563, 0.5
        %v1628 = vmul.f32 %v1564, 0.5
        %v1629 = vmul.f32 %v1565, 0.5
        %v1630 = vmul.f32 %v1566, 0.5
        %v1631 = vmul.f32 %v1567, 0.5
        %v1632 = vmul.f32 %v1568, 0.5
        %v1633 = vmul.f32 %v1569, 0.5
        %v1634 = vmul.f32 %v1570, 0.5
        %v1635 = vmul.f32 %v1571, 0.5
        %v1636 = vmul.f32 %v1572, 0.5
        %v1637 = vmul.f32 %v1573, 0.5
        %v1638 = vmul.f32 %v1574, 0.5
        %v1639 = vmul.f32 %v1575, 0.5
        %v1640 = vmul.f32 %v1576, 0.5
        %v1641 = vmul.f32 %v1577, 0.5
        %v1642 = vmul.f32 %v1578, 0.5
        %v1643 = vmul.f32 %v1579, 0.5
        %v1644 = vmul.f32 %v1580, 0.5
        %v1645 = vmul.f32 %v1581, 0.5
        %v1646 = vmul.f32 %v1582, 0.5
        %v1647 = vmul.f32 %v1583, 0.5
        %v1648 = vmul.f32 %v977, %v1584
        %v1649 = vmul.f32 %v979, %v1585
        %v1650 = vmul.f32 %v982, %v1586
        %v1651 = vmul.f32 %v984, %v1587
        %v1652 = vmul.f32 %v987, %v1588
        %v1653 = vmul.f32 %v989, %v1589
        %v1654 = vmul.f32 %v992, %v1590
        %v1655 = vmul.f32 %v994, %v1591
        %v1656 = vmul.f32 %v997, %v1592
        %v1657 = vmul.f32 %v999, %v1593
        %v1658 = vmul.f32 %v1002, %v1594
        %v1659 = vmul.f32 %v1004, %v1595
        %v1660 = vmul.f32 %v1007, %v1596
        %v1661 = vmul.f32 %v1009, %v1597
        %v1662 = vmul.f32 %v1012, %v1598
        %v1663 = vmul.f32 %v1014, %v1599
        %v1664 = vmul.f32 %v1017, %v1600
        %v1665 = vmul.f32 %v1019, %v1601
        %v1666 = vmul.f32 %v1022, %v1602
        %v1667 = vmul.f32 %v1024, %v1603
        %v1668 = vmul.f32 %v1027, %v1604
        %v1669 = vmul.f32 %v1029, %v1605
        %v1670 = vmul.f32 %v1032, %v1606
        %v1671 = vmul.f32 %v1034, %v1607
        %v1672 = vmul.f32 %v1037, %v1608
        %v1673 = vmul.f32 %v1039, %v1609
        %v1674 = vmul.f32 %v1042, %v1610
        %v1675 = vmul.f32 %v1044, %v1611
        %v1676 = vmul.f32 %v1047, %v1612
        %v1677 = vmul.f32 %v1049, %v1613
        %v1678 = vmul.f32 %v1052, %v1614
        %v1679 = vmul.f32 %v1054, %v1615
        %v1680 = vmul.f32 %v1057, %v1616
        %v1681 = vmul.f32 %v1059, %v1617
        %v1682 = vmul.f32 %v1062, %v1618
        %v1683 = vmul.f32 %v1064, %v1619
        %v1684 = vmul.f32 %v1067, %v1620
        %v1685 = vmul.f32 %v1069, %v1621
        %v1686 = vmul.f32 %v1072, %v1622
        %v1687 = vmul.f32 %v1074, %v1623
        %v1688 = vmul.f32 %v1077, %v1624
        %v1689 = vmul.f32 %v1079, %v1625
        %v1690 = vmul.f32 %v1082, %v1626
        %v1691 = vmul.f32 %v1084, %v1627
        %v1692 = vmul.f32 %v1087, %v1628
        %v1693 = vmul.f32 %v1089, %v1629
        %v1694 = vmul.f32 %v1092, %v1630
        %v1695 = vmul.f32 %v1094, %v1631
        %v1696 = vmul.f32 %v1097, %v1632
        %v1697 = vmul.f32 %v1099, %v1633
        %v1698 = vmul.f32 %v1102, %v1634
        %v1699 = vmul.f32 %v1104, %v1635
        %v1700 = vmul.f32 %v1107, %v1636
        %v1701 = vmul.f32 %v1109, %v1637
        %v1702 = vmul.f32 %v1112, %v1638
        %v1703 = vmul.f32 %v1114, %v1639
        %v1704 = vmul.f32 %v1117, %v1640
        %v1705 = vmul.f32 %v1119, %v1641
        %v1706 = vmul.f32 %v1122, %v1642
        %v1707 = vmul.f32 %v1124, %v1643
        %v1708 = vmul.f32 %v1127, %v1644
        %v1709 = vmul.f32 %v1129, %v1645
        %v1710 = vmul.f32 %v1132, %v1646
        %v1711 = vmul.f32 %v1134, %v1647
        %v1712 = vld [vmem:[%s3] sm:$0xff]
        %v1713 = vld [vmem:[%s3 + $0x8] sm:$0xff]
        %v1714 = vld [vmem:[%s3 + $0x10] sm:$0xff]
        %v1715 = vld [vmem:[%s3 + $0x18] sm:$0xff]
        %v1716 = vld [vmem:[%s3 + $0x20] sm:$0xff]
        %v1717 = vld [vmem:[%s3 + $0x28] sm:$0xff]
        %v1718 = vld [vmem:[%s3 + $0x30] sm:$0xff]
        %v1719 = vld [vmem:[%s3 + $0x38] sm:$0xff]
        %v1720 = vld [vmem:[%s3 + $0x40] sm:$0xff]
        %v1721 = vld [vmem:[%s3 + $0x48] sm:$0xff]
        %v1722 = vld [vmem:[%s3 + $0x50] sm:$0xff]
        %v1723 = vld [vmem:[%s3 + $0x58] sm:$0xff]
        %v1724 = vld [vmem:[%s3 + $0x60] sm:$0xff]
        %v1725 = vld [vmem:[%s3 + $0x68] sm:$0xff]
        %v1726 = vld [vmem:[%s3 + $0x70] sm:$0xff]
        %v1727 = vld [vmem:[%s3 + $0x78] sm:$0xff]
        %v1728 = vld [vmem:[%s3 + $0x80] sm:$0xff]
        %v1729 = vld [vmem:[%s3 + $0x88] sm:$0xff]
        %v1730 = vld [vmem:[%s3 + $0x90] sm:$0xff]
        %v1731 = vld [vmem:[%s3 + $0x98] sm:$0xff]
        %v1732 = vld [vmem:[%s3 + $0xa0] sm:$0xff]
        %v1733 = vld [vmem:[%s3 + $0xa8] sm:$0xff]
        %v1734 = vld [vmem:[%s3 + $0xb0] sm:$0xff]
        %v1735 = vld [vmem:[%s3 + $0xb8] sm:$0xff]
        %v1736 = vld [vmem:[%s3 + $0xc0] sm:$0xff]
        %v1737 = vld [vmem:[%s3 + $0xc8] sm:$0xff]
        %v1738 = vld [vmem:[%s3 + $0xd0] sm:$0xff]
        %v1739 = vld [vmem:[%s3 + $0xd8] sm:$0xff]
        %v1740 = vld [vmem:[%s3 + $0xe0] sm:$0xff]
        %v1741 = vld [vmem:[%s3 + $0xe8] sm:$0xff]
        %v1742 = vld [vmem:[%s3 + $0xf0] sm:$0xff]
        %v1743 = vld [vmem:[%s3 + $0xf8] sm:$0xff]
        %v1744 = vld [vmem:[%s3 + $0x100] sm:$0xff]
        %v1745 = vld [vmem:[%s3 + $0x108] sm:$0xff]
        %v1746 = vld [vmem:[%s3 + $0x110] sm:$0xff]
        %v1747 = vld [vmem:[%s3 + $0x118] sm:$0xff]
        %v1748 = vld [vmem:[%s3 + $0x120] sm:$0xff]
        %v1749 = vld [vmem:[%s3 + $0x128] sm:$0xff]
        %v1750 = vld [vmem:[%s3 + $0x130] sm:$0xff]
        %v1751 = vld [vmem:[%s3 + $0x138] sm:$0xff]
        %v1752 = vld [vmem:[%s3 + $0x140] sm:$0xff]
        %v1753 = vld [vmem:[%s3 + $0x148] sm:$0xff]
        %v1754 = vld [vmem:[%s3 + $0x150] sm:$0xff]
        %v1755 = vld [vmem:[%s3 + $0x158] sm:$0xff]
        %v1756 = vld [vmem:[%s3 + $0x160] sm:$0xff]
        %v1757 = vld [vmem:[%s3 + $0x168] sm:$0xff]
        %v1758 = vld [vmem:[%s3 + $0x170] sm:$0xff]
        %v1759 = vld [vmem:[%s3 + $0x178] sm:$0xff]
        %v1760 = vld [vmem:[%s3 + $0x180] sm:$0xff]
        %v1761 = vld [vmem:[%s3 + $0x188] sm:$0xff]
        %v1762 = vld [vmem:[%s3 + $0x190] sm:$0xff]
        %v1763 = vld [vmem:[%s3 + $0x198] sm:$0xff]
        %v1764 = vld [vmem:[%s3 + $0x1a0] sm:$0xff]
        %v1765 = vld [vmem:[%s3 + $0x1a8] sm:$0xff]
        %v1766 = vld [vmem:[%s3 + $0x1b0] sm:$0xff]
        %v1767 = vld [vmem:[%s3 + $0x1b8] sm:$0xff]
        %v1768 = vld [vmem:[%s3 + $0x1c0] sm:$0xff]
        %v1769 = vld [vmem:[%s3 + $0x1c8] sm:$0xff]
        %v1770 = vld [vmem:[%s3 + $0x1d0] sm:$0xff]
        %v1771 = vld [vmem:[%s3 + $0x1d8] sm:$0xff]
        %v1772 = vld [vmem:[%s3 + $0x1e0] sm:$0xff]
        %v1773 = vld [vmem:[%s3 + $0x1e8] sm:$0xff]
        %v1774 = vld [vmem:[%s3 + $0x1f0] sm:$0xff]
        %v1775 = vld [vmem:[%s3 + $0x1f8] sm:$0xff]
        %1777 = vset.pattern.permute.xlu0 0
        %1778 = vperm.xlu0 %1777, %v1712
        %v1779 = vpop.permute.xlu0 %1778
        %1782 = vset.pattern.permute.xlu0 0
        %1783 = vperm.xlu0 %1782, %v1713
        %v1784 = vpop.permute.xlu0 %1783
        %1787 = vset.pattern.permute.xlu0 0
        %1788 = vperm.xlu0 %1787, %v1714
        %v1789 = vpop.permute.xlu0 %1788
        %1792 = vset.pattern.permute.xlu0 0
        %1793 = vperm.xlu0 %1792, %v1715
        %v1794 = vpop.permute.xlu0 %1793
        %1797 = vset.pattern.permute.xlu0 0
        %1798 = vperm.xlu0 %1797, %v1716
        %v1799 = vpop.permute.xlu0 %1798
        %1802 = vset.pattern.permute.xlu0 0
        %1803 = vperm.xlu0 %1802, %v1717
        %v1804 = vpop.permute.xlu0 %1803
        %1807 = vset.pattern.permute.xlu0 0
        %1808 = vperm.xlu0 %1807, %v1718
        %v1809 = vpop.permute.xlu0 %1808
        %1812 = vset.pattern.permute.xlu0 0
        %1813 = vperm.xlu0 %1812, %v1719
        %v1814 = vpop.permute.xlu0 %1813
        %1817 = vset.pattern.permute.xlu0 0
        %1818 = vperm.xlu0 %1817, %v1720
        %v1819 = vpop.permute.xlu0 %1818
        %1822 = vset.pattern.permute.xlu0 0
        %1823 = vperm.xlu0 %1822, %v1721
        %v1824 = vpop.permute.xlu0 %1823
        %1827 = vset.pattern.permute.xlu0 0
        %1828 = vperm.xlu0 %1827, %v1722
        %v1829 = vpop.permute.xlu0 %1828
        %1832 = vset.pattern.permute.xlu0 0
        %1833 = vperm.xlu0 %1832, %v1723
        %v1834 = vpop.permute.xlu0 %1833
        %1837 = vset.pattern.permute.xlu0 0
        %1838 = vperm.xlu0 %1837, %v1724
        %v1839 = vpop.permute.xlu0 %1838
        %1842 = vset.pattern.permute.xlu0 0
        %1843 = vperm.xlu0 %1842, %v1725
        %v1844 = vpop.permute.xlu0 %1843
        %1847 = vset.pattern.permute.xlu0 0
        %1848 = vperm.xlu0 %1847, %v1726
        %v1849 = vpop.permute.xlu0 %1848
        %1852 = vset.pattern.permute.xlu0 0
        %1853 = vperm.xlu0 %1852, %v1727
        %v1854 = vpop.permute.xlu0 %1853
        %1857 = vset.pattern.permute.xlu0 0
        %1858 = vperm.xlu0 %1857, %v1728
        %v1859 = vpop.permute.xlu0 %1858
        %1862 = vset.pattern.permute.xlu0 0
        %1863 = vperm.xlu0 %1862, %v1729
        %v1864 = vpop.permute.xlu0 %1863
        %1867 = vset.pattern.permute.xlu0 0
        %1868 = vperm.xlu0 %1867, %v1730
        %v1869 = vpop.permute.xlu0 %1868
        %1872 = vset.pattern.permute.xlu0 0
        %1873 = vperm.xlu0 %1872, %v1731
        %v1874 = vpop.permute.xlu0 %1873
        %1877 = vset.pattern.permute.xlu0 0
        %1878 = vperm.xlu0 %1877, %v1732
        %v1879 = vpop.permute.xlu0 %1878
        %1882 = vset.pattern.permute.xlu0 0
        %1883 = vperm.xlu0 %1882, %v1733
        %v1884 = vpop.permute.xlu0 %1883
        %1887 = vset.pattern.permute.xlu0 0
        %1888 = vperm.xlu0 %1887, %v1734
        %v1889 = vpop.permute.xlu0 %1888
        %1892 = vset.pattern.permute.xlu0 0
        %1893 = vperm.xlu0 %1892, %v1735
        %v1894 = vpop.permute.xlu0 %1893
        %1897 = vset.pattern.permute.xlu0 0
        %1898 = vperm.xlu0 %1897, %v1736
        %v1899 = vpop.permute.xlu0 %1898
        %1902 = vset.pattern.permute.xlu0 0
        %1903 = vperm.xlu0 %1902, %v1737
        %v1904 = vpop.permute.xlu0 %1903
        %1907 = vset.pattern.permute.xlu0 0
        %1908 = vperm.xlu0 %1907, %v1738
        %v1909 = vpop.permute.xlu0 %1908
        %1912 = vset.pattern.permute.xlu0 0
        %1913 = vperm.xlu0 %1912, %v1739
        %v1914 = vpop.permute.xlu0 %1913
        %1917 = vset.pattern.permute.xlu0 0
        %1918 = vperm.xlu0 %1917, %v1740
        %v1919 = vpop.permute.xlu0 %1918
        %1922 = vset.pattern.permute.xlu0 0
        %1923 = vperm.xlu0 %1922, %v1741
        %v1924 = vpop.permute.xlu0 %1923
        %1927 = vset.pattern.permute.xlu0 0
        %1928 = vperm.xlu0 %1927, %v1742
        %v1929 = vpop.permute.xlu0 %1928
        %1932 = vset.pattern.permute.xlu0 0
        %1933 = vperm.xlu0 %1932, %v1743
        %v1934 = vpop.permute.xlu0 %1933
        %1937 = vset.pattern.permute.xlu0 0
        %1938 = vperm.xlu0 %1937, %v1744
        %v1939 = vpop.permute.xlu0 %1938
        %1942 = vset.pattern.permute.xlu0 0
        %1943 = vperm.xlu0 %1942, %v1745
        %v1944 = vpop.permute.xlu0 %1943
        %1947 = vset.pattern.permute.xlu0 0
        %1948 = vperm.xlu0 %1947, %v1746
        %v1949 = vpop.permute.xlu0 %1948
        %1952 = vset.pattern.permute.xlu0 0
        %1953 = vperm.xlu0 %1952, %v1747
        %v1954 = vpop.permute.xlu0 %1953
        %1957 = vset.pattern.permute.xlu0 0
        %1958 = vperm.xlu0 %1957, %v1748
        %v1959 = vpop.permute.xlu0 %1958
        %1962 = vset.pattern.permute.xlu0 0
        %1963 = vperm.xlu0 %1962, %v1749
        %v1964 = vpop.permute.xlu0 %1963
        %1967 = vset.pattern.permute.xlu0 0
        %1968 = vperm.xlu0 %1967, %v1750
        %v1969 = vpop.permute.xlu0 %1968
        %1972 = vset.pattern.permute.xlu0 0
        %1973 = vperm.xlu0 %1972, %v1751
        %v1974 = vpop.permute.xlu0 %1973
        %1977 = vset.pattern.permute.xlu0 0
        %1978 = vperm.xlu0 %1977, %v1752
        %v1979 = vpop.permute.xlu0 %1978
        %1982 = vset.pattern.permute.xlu0 0
        %1983 = vperm.xlu0 %1982, %v1753
        %v1984 = vpop.permute.xlu0 %1983
        %1987 = vset.pattern.permute.xlu0 0
        %1988 = vperm.xlu0 %1987, %v1754
        %v1989 = vpop.permute.xlu0 %1988
        %1992 = vset.pattern.permute.xlu0 0
        %1993 = vperm.xlu0 %1992, %v1755
        %v1994 = vpop.permute.xlu0 %1993
        %1997 = vset.pattern.permute.xlu0 0
        %1998 = vperm.xlu0 %1997, %v1756
        %v1999 = vpop.permute.xlu0 %1998
        %2002 = vset.pattern.permute.xlu0 0
        %2003 = vperm.xlu0 %2002, %v1757
        %v2004 = vpop.permute.xlu0 %2003
        %2007 = vset.pattern.permute.xlu0 0
        %2008 = vperm.xlu0 %2007, %v1758
        %v2009 = vpop.permute.xlu0 %2008
        %2012 = vset.pattern.permute.xlu0 0
        %2013 = vperm.xlu0 %2012, %v1759
        %v2014 = vpop.permute.xlu0 %2013
        %2017 = vset.pattern.permute.xlu0 0
        %2018 = vperm.xlu0 %2017, %v1760
        %v2019 = vpop.permute.xlu0 %2018
        %2022 = vset.pattern.permute.xlu0 0
        %2023 = vperm.xlu0 %2022, %v1761
        %v2024 = vpop.permute.xlu0 %2023
        %2027 = vset.pattern.permute.xlu0 0
        %2028 = vperm.xlu0 %2027, %v1762
        %v2029 = vpop.permute.xlu0 %2028
        %2032 = vset.pattern.permute.xlu0 0
        %2033 = vperm.xlu0 %2032, %v1763
        %v2034 = vpop.permute.xlu0 %2033
        %2037 = vset.pattern.permute.xlu0 0
        %2038 = vperm.xlu0 %2037, %v1764
        %v2039 = vpop.permute.xlu0 %2038
        %2042 = vset.pattern.permute.xlu0 0
        %2043 = vperm.xlu0 %2042, %v1765
        %v2044 = vpop.permute.xlu0 %2043
        %2047 = vset.pattern.permute.xlu0 0
        %2048 = vperm.xlu0 %2047, %v1766
        %v2049 = vpop.permute.xlu0 %2048
        %2052 = vset.pattern.permute.xlu0 0
        %2053 = vperm.xlu0 %2052, %v1767
        %v2054 = vpop.permute.xlu0 %2053
        %2057 = vset.pattern.permute.xlu0 0
        %2058 = vperm.xlu0 %2057, %v1768
        %v2059 = vpop.permute.xlu0 %2058
        %2062 = vset.pattern.permute.xlu0 0
        %2063 = vperm.xlu0 %2062, %v1769
        %v2064 = vpop.permute.xlu0 %2063
        %2067 = vset.pattern.permute.xlu0 0
        %2068 = vperm.xlu0 %2067, %v1770
        %v2069 = vpop.permute.xlu0 %2068
        %2072 = vset.pattern.permute.xlu0 0
        %2073 = vperm.xlu0 %2072, %v1771
        %v2074 = vpop.permute.xlu0 %2073
        %2077 = vset.pattern.permute.xlu0 0
        %2078 = vperm.xlu0 %2077, %v1772
        %v2079 = vpop.permute.xlu0 %2078
        %2082 = vset.pattern.permute.xlu0 0
        %2083 = vperm.xlu0 %2082, %v1773
        %v2084 = vpop.permute.xlu0 %2083
        %2087 = vset.pattern.permute.xlu0 0
        %2088 = vperm.xlu0 %2087, %v1774
        %v2089 = vpop.permute.xlu0 %2088
        %2092 = vset.pattern.permute.xlu0 0
        %2093 = vperm.xlu0 %2092, %v1775
        %v2094 = vpop.permute.xlu0 %2093
        %v2096 = vmul.f32 %v1648, %v1779
        %v2097 = vmul.f32 %v1649, %v1784
        %v2098 = vmul.f32 %v1650, %v1789
        %v2099 = vmul.f32 %v1651, %v1794
        %v2100 = vmul.f32 %v1652, %v1799
        %v2101 = vmul.f32 %v1653, %v1804
        %v2102 = vmul.f32 %v1654, %v1809
        %v2103 = vmul.f32 %v1655, %v1814
        %v2104 = vmul.f32 %v1656, %v1819
        %v2105 = vmul.f32 %v1657, %v1824
        %v2106 = vmul.f32 %v1658, %v1829
        %v2107 = vmul.f32 %v1659, %v1834
        %v2108 = vmul.f32 %v1660, %v1839
        %v2109 = vmul.f32 %v1661, %v1844
        %v2110 = vmul.f32 %v1662, %v1849
        %v2111 = vmul.f32 %v1663, %v1854
        %v2112 = vmul.f32 %v1664, %v1859
        %v2113 = vmul.f32 %v1665, %v1864
        %v2114 = vmul.f32 %v1666, %v1869
        %v2115 = vmul.f32 %v1667, %v1874
        %v2116 = vmul.f32 %v1668, %v1879
        %v2117 = vmul.f32 %v1669, %v1884
        %v2118 = vmul.f32 %v1670, %v1889
        %v2119 = vmul.f32 %v1671, %v1894
        %v2120 = vmul.f32 %v1672, %v1899
        %v2121 = vmul.f32 %v1673, %v1904
        %v2122 = vmul.f32 %v1674, %v1909
        %v2123 = vmul.f32 %v1675, %v1914
        %v2124 = vmul.f32 %v1676, %v1919
        %v2125 = vmul.f32 %v1677, %v1924
        %v2126 = vmul.f32 %v1678, %v1929
        %v2127 = vmul.f32 %v1679, %v1934
        %v2128 = vmul.f32 %v1680, %v1939
        %v2129 = vmul.f32 %v1681, %v1944
        %v2130 = vmul.f32 %v1682, %v1949
        %v2131 = vmul.f32 %v1683, %v1954
        %v2132 = vmul.f32 %v1684, %v1959
        %v2133 = vmul.f32 %v1685, %v1964
        %v2134 = vmul.f32 %v1686, %v1969
        %v2135 = vmul.f32 %v1687, %v1974
        %v2136 = vmul.f32 %v1688, %v1979
        %v2137 = vmul.f32 %v1689, %v1984
        %v2138 = vmul.f32 %v1690, %v1989
        %v2139 = vmul.f32 %v1691, %v1994
        %v2140 = vmul.f32 %v1692, %v1999
        %v2141 = vmul.f32 %v1693, %v2004
        %v2142 = vmul.f32 %v1694, %v2009
        %v2143 = vmul.f32 %v1695, %v2014
        %v2144 = vmul.f32 %v1696, %v2019
        %v2145 = vmul.f32 %v1697, %v2024
        %v2146 = vmul.f32 %v1698, %v2029
        %v2147 = vmul.f32 %v1699, %v2034
        %v2148 = vmul.f32 %v1700, %v2039
        %v2149 = vmul.f32 %v1701, %v2044
        %v2150 = vmul.f32 %v1702, %v2049
        %v2151 = vmul.f32 %v1703, %v2054
        %v2152 = vmul.f32 %v1704, %v2059
        %v2153 = vmul.f32 %v1705, %v2064
        %v2154 = vmul.f32 %v1706, %v2069
        %v2155 = vmul.f32 %v1707, %v2074
        %v2156 = vmul.f32 %v1708, %v2079
        %v2157 = vmul.f32 %v1709, %v2084
        %v2158 = vmul.f32 %v1710, %v2089
        %v2159 = vmul.f32 %v1711, %v2094
        %v2160 = vadd.f32 %v2096, %v2097
        %v2161 = vadd.f32 %v2160, %v2098
        %v2162 = vadd.f32 %v2161, %v2099
        %v2163 = vadd.f32 %v2162, %v2100
        %v2164 = vadd.f32 %v2163, %v2101
        %v2165 = vadd.f32 %v2164, %v2102
        %v2166 = vadd.f32 %v2165, %v2103
        %v2167 = vadd.f32 %v2166, %v2104
        %v2168 = vadd.f32 %v2167, %v2105
        %v2169 = vadd.f32 %v2168, %v2106
        %v2170 = vadd.f32 %v2169, %v2107
        %v2171 = vadd.f32 %v2170, %v2108
        %v2172 = vadd.f32 %v2171, %v2109
        %v2173 = vadd.f32 %v2172, %v2110
        %v2174 = vadd.f32 %v2173, %v2111
        %v2175 = vadd.f32 %v2174, %v2112
        %v2176 = vadd.f32 %v2175, %v2113
        %v2177 = vadd.f32 %v2176, %v2114
        %v2178 = vadd.f32 %v2177, %v2115
        %v2179 = vadd.f32 %v2178, %v2116
        %v2180 = vadd.f32 %v2179, %v2117
        %v2181 = vadd.f32 %v2180, %v2118
        %v2182 = vadd.f32 %v2181, %v2119
        %v2183 = vadd.f32 %v2182, %v2120
        %v2184 = vadd.f32 %v2183, %v2121
        %v2185 = vadd.f32 %v2184, %v2122
        %v2186 = vadd.f32 %v2185, %v2123
        %v2187 = vadd.f32 %v2186, %v2124
        %v2188 = vadd.f32 %v2187, %v2125
        %v2189 = vadd.f32 %v2188, %v2126
        %v2190 = vadd.f32 %v2189, %v2127
        %v2191 = vadd.f32 %v2190, %v2128
        %v2192 = vadd.f32 %v2191, %v2129
        %v2193 = vadd.f32 %v2192, %v2130
        %v2194 = vadd.f32 %v2193, %v2131
        %v2195 = vadd.f32 %v2194, %v2132
        %v2196 = vadd.f32 %v2195, %v2133
        %v2197 = vadd.f32 %v2196, %v2134
        %v2198 = vadd.f32 %v2197, %v2135
        %v2199 = vadd.f32 %v2198, %v2136
        %v2200 = vadd.f32 %v2199, %v2137
        %v2201 = vadd.f32 %v2200, %v2138
        %v2202 = vadd.f32 %v2201, %v2139
        %v2203 = vadd.f32 %v2202, %v2140
        %v2204 = vadd.f32 %v2203, %v2141
        %v2205 = vadd.f32 %v2204, %v2142
        %v2206 = vadd.f32 %v2205, %v2143
        %v2207 = vadd.f32 %v2206, %v2144
        %v2208 = vadd.f32 %v2207, %v2145
        %v2209 = vadd.f32 %v2208, %v2146
        %v2210 = vadd.f32 %v2209, %v2147
        %v2211 = vadd.f32 %v2210, %v2148
        %v2212 = vadd.f32 %v2211, %v2149
        %v2213 = vadd.f32 %v2212, %v2150
        %v2214 = vadd.f32 %v2213, %v2151
        %v2215 = vadd.f32 %v2214, %v2152
        %v2216 = vadd.f32 %v2215, %v2153
        %v2217 = vadd.f32 %v2216, %v2154
        %v2218 = vadd.f32 %v2217, %v2155
        %v2219 = vadd.f32 %v2218, %v2156
        %v2220 = vadd.f32 %v2219, %v2157
        %v2221 = vadd.f32 %v2220, %v2158
        %v2222 = vadd.f32 %v2221, %v2159
        %v2223 = vrot.slane %v2222, 4
        %v2224 = vadd.f32 %v2222, %v2223
        %v2225 = vrot.slane %v2224, 2
        %v2226 = vadd.f32 %v2224, %v2225
        %v2227 = vrot.slane %v2226, 1
        %v2228 = vadd.f32 %v2226, %v2227
        %v2229 = vadd.f32 %v2228, 0.0
        %v2230 = vld [vmem:[%s302] sm:$0x1]
        %vm2231 = vcmp.ge.s32.totalorder %v2230, 0
        %s2232 = sld [smem:[#allocation2]]
        %v2233 = vstv %s2232
        %v2234 = vadd.f32 %v2229, %v2233
        %v2235 = vsel %vm2231, %v2234, 0.0
        %2236 = vst [vmem:[%s287] sm:$0x1] %v2235
        %v2237 = vlaneseq
        %v2238 = vshrl.u32 %v2237, 7
        %v2239 = vadd.s32 %v2238, 8
        %v2240 = vadd.s32 %v2238, 16
        %v2241 = vadd.s32 %v2238, 24
        %v2242 = vadd.s32 %v2238, 32
        %v2243 = vadd.s32 %v2238, 40
        %v2244 = vadd.s32 %v2238, 48
        %v2245 = vadd.s32 %v2238, 56
        %v2246 = vadd.s32 %v2238, 64
        %v2247 = vadd.s32 %v2238, 72
        %v2248 = vadd.s32 %v2238, 80
        %v2249 = vadd.s32 %v2238, 88
        %v2250 = vadd.s32 %v2238, 96
        %v2251 = vadd.s32 %v2238, 104
        %v2252 = vadd.s32 %v2238, 112
        %v2253 = vadd.s32 %v2238, 120
        %v2254 = vperm.slane %v2230, 0
        %vm2255 = vcmp.eq.s32.totalorder %v2238, %v2254
        %vm2256 = vcmp.eq.s32.totalorder %v2239, %v2254
        %vm2257 = vcmp.eq.s32.totalorder %v2240, %v2254
        %vm2258 = vcmp.eq.s32.totalorder %v2241, %v2254
        %vm2259 = vcmp.eq.s32.totalorder %v2242, %v2254
        %vm2260 = vcmp.eq.s32.totalorder %v2243, %v2254
        %vm2261 = vcmp.eq.s32.totalorder %v2244, %v2254
        %vm2262 = vcmp.eq.s32.totalorder %v2245, %v2254
        %vm2263 = vcmp.eq.s32.totalorder %v2246, %v2254
        %vm2264 = vcmp.eq.s32.totalorder %v2247, %v2254
        %vm2265 = vcmp.eq.s32.totalorder %v2248, %v2254
        %vm2266 = vcmp.eq.s32.totalorder %v2249, %v2254
        %vm2267 = vcmp.eq.s32.totalorder %v2250, %v2254
        %vm2268 = vcmp.eq.s32.totalorder %v2251, %v2254
        %vm2269 = vcmp.eq.s32.totalorder %v2252, %v2254
        %vm2270 = vcmp.eq.s32.totalorder %v2253, %v2254
        %v2271 = vsel %vm2255, 1, 0
        %v2272 = vsel %vm2256, 1, 0
        %v2273 = vsel %vm2257, 1, 0
        %v2274 = vsel %vm2258, 1, 0
        %v2275 = vsel %vm2259, 1, 0
        %v2276 = vsel %vm2260, 1, 0
        %v2277 = vsel %vm2261, 1, 0
        %v2278 = vsel %vm2262, 1, 0
        %v2279 = vsel %vm2263, 1, 0
        %v2280 = vsel %vm2264, 1, 0
        %v2281 = vsel %vm2265, 1, 0
        %v2282 = vsel %vm2266, 1, 0
        %v2283 = vsel %vm2267, 1, 0
        %v2284 = vsel %vm2268, 1, 0
        %v2285 = vsel %vm2269, 1, 0
        %v2286 = vsel %vm2270, 1, 0
        %v2287 = vcvt.s32.f32 %v2271
        %v2288 = vcvt.s32.f32 %v2272
        %v2289 = vcvt.s32.f32 %v2273
        %v2290 = vcvt.s32.f32 %v2274
        %v2291 = vcvt.s32.f32 %v2275
        %v2292 = vcvt.s32.f32 %v2276
        %v2293 = vcvt.s32.f32 %v2277
        %v2294 = vcvt.s32.f32 %v2278
        %v2295 = vcvt.s32.f32 %v2279
        %v2296 = vcvt.s32.f32 %v2280
        %v2297 = vcvt.s32.f32 %v2281
        %v2298 = vcvt.s32.f32 %v2282
        %v2299 = vcvt.s32.f32 %v2283
        %v2300 = vcvt.s32.f32 %v2284
        %v2301 = vcvt.s32.f32 %v2285
        %v2302 = vcvt.s32.f32 %v2286
        %2303 = vmatpush.xpose.msra.mxu0 %v2302
        %2304 = vmatpush.xpose.msra.mxu0 %v2301
        %2305 = vmatpush.xpose.msra.mxu0 %v2300
        %2306 = vmatpush.xpose.msra.mxu0 %v2299
        %2307 = vmatpush.xpose.msra.mxu0 %v2298
        %2308 = vmatpush.xpose.msra.mxu0 %v2297
        %2309 = vmatpush.xpose.msra.mxu0 %v2296
        %2310 = vmatpush.xpose.msra.mxu0 %v2295
        %2311 = vmatpush.xpose.msra.mxu0 %v2294
        %2312 = vmatpush.xpose.msra.mxu0 %v2293
        %2313 = vmatpush.xpose.msra.mxu0 %v2292
        %2314 = vmatpush.xpose.msra.mxu0 %v2291
        %2315 = vmatpush.xpose.msra.mxu0 %v2290
        %2316 = vmatpush.xpose.msra.mxu0 %v2289
        %2317 = vmatpush.xpose.msra.mxu0 %v2288
        %2318 = vmatpush.xpose.msra.mxu0 %v2287
        %2319 = vmatmul.f32.gmra.mxu0 %v2235
        %v2320 = vpop.f32.mrf.mxu0
        %v2321 = vadd.f32 0.0, %v2320
        %2322 = vdwg.mxu0
        %2323 = vst [vmem:[%s293] sm:$0x1] %v2321
        %s2324 = sand.u32 %s170, 1
        %s2325 = scalar_lea.sflag [#allocation4], %s2324
        %s2326 = sand.u32 %s170, 1
        %s2327 = scalar_lea.vmem [#allocation3], %s2326
        %s2328 = sand.u32 %s196, 1
        %s2329 = scalar_lea.sflag [#allocation6], %s2328
        %s2330 = sand.u32 %s196, 1
        %s2331 = scalar_lea.vmem [#allocation5], %s2330
        // Predicated region
        $region45: #{tpu_custom_call.1} parent=43 // pred_check
          %p2332 = pneg %p180
        $region46: #{tpu_custom_call.1} parent=43 // pred_check_branch
          %2334 = sbr.rel (%p2332) target = $region48
        $region47: #{tpu_custom_call.1} parent=43 // pred_region
          %2336 = vsyncadd %s2325, 0
          %s2337 = scalar_lea.hbm %s6, %s26
          %s2339 = sshll.u32 %s2327, 4
          %s2340 = int_to_ptr.vmem [resolvable:$true] %s2339
          %s2341 = sshll.u32 %s2337, 4
          %s2342 = int_to_ptr.hbm [resolvable:$true] %s2341
          %2344 = dma.vmem_to_hbm [thread:$0]  %s2340, 16, %s2342, %s2325
        $region48: #{tpu_custom_call.1} parent=43 // pred_fallthru
          _
        // Predicated region
        $region49: #{tpu_custom_call.1} parent=43 // pred_check
          %p2345 = pneg %p206
        $region50: #{tpu_custom_call.1} parent=43 // pred_check_branch
          %2347 = sbr.rel (%p2345) target = $region52
        $region51: #{tpu_custom_call.1} parent=43 // pred_region
          %2349 = vsyncadd %s2329, 0
          %s2350 = scalar_lea.hbm %s7, %s26
          %s2352 = sshll.u32 %s2331, 4
          %s2353 = int_to_ptr.vmem [resolvable:$true] %s2352
          %s2354 = sshll.u32 %s2350, 4
          %s2355 = int_to_ptr.hbm [resolvable:$true] %s2354
          %2357 = dma.vmem_to_hbm [thread:$0]  %s2353, 16, %s2355, %s2329
        $region52: #{tpu_custom_call.1} parent=43 // pred_fallthru
          _
      $region44: #{tpu_custom_call.1} parent=5 // pred_fallthru
        _
      %p2358 = scmp.le.s32.totalorder 2, %s21
      // Predicated region
      $region53: #{tpu_custom_call.1} parent=5 // pred_check
        %p2359 = pneg %p2358
      $region54: #{tpu_custom_call.1} parent=5 // pred_check_branch
        %2361 = sbr.rel (%p2359) target = $region56
      $region55: #{tpu_custom_call.1} parent=5 // pred_region
        %s2362 = ssub.s32 %s21, 2
        // Predicated region
        $region57: #{tpu_custom_call.1} parent=55 // pred_check
          %p2363 = pneg %p186
        $region58: #{tpu_custom_call.1} parent=55 // pred_check_branch
          %2365 = sbr.rel (%p2363) target = $region60
        $region59: #{tpu_custom_call.1} parent=55 // pred_region
          %s2366 = sand.u32 %s171, 1
          %s2367 = scalar_lea.sflag [#allocation4], %s2366
          %s2368 = sand.u32 %s171, 1
          %s2369 = scalar_lea.vmem [#allocation3], %s2368
          %2371 = dma.done %s2367, 16
        $region60: #{tpu_custom_call.1} parent=55 // pred_fallthru
          _
        // Predicated region
        $region61: #{tpu_custom_call.1} parent=55 // pred_check
          %p2372 = pneg %p212
        $region62: #{tpu_custom_call.1} parent=55 // pred_check_branch
          %2374 = sbr.rel (%p2372) target = $region64
        $region63: #{tpu_custom_call.1} parent=55 // pred_region
          %s2375 = sand.u32 %s197, 1
          %s2376 = scalar_lea.sflag [#allocation6], %s2375
          %s2377 = sand.u32 %s197, 1
          %s2378 = scalar_lea.vmem [#allocation5], %s2377
          %2380 = dma.done %s2376, 16
        $region64: #{tpu_custom_call.1} parent=55 // pred_fallthru
          _
      $region56: #{tpu_custom_call.1} parent=5 // pred_fallthru
        _
    $region6: #{tpu_custom_call.1} parent=1 // loop_footer
      %s25 = sadd.s32 1, %s21
    $region7: #{tpu_custom_call.1} parent=1 // loop_footer_branch
      %20 = sbr.rel target = $region3
    $region8: #{tpu_custom_call.1} parent=1 // loop_exit
      _
    %2381 = vsyncpa [#allocation4], 1
    %s2382 = scalar_lea.sflag [#allocation4], 1
    %2383 = vsyncpa %s2382, 1
    %2384 = vsyncpa [#allocation6], 1
    %s2385 = scalar_lea.sflag [#allocation6], 1
    %2386 = vsyncpa %s2385, 1

</llo_original>
